<compile_context>
chip_gen: v7x
topology: tpu7x:2x2x1
jax: 0.10.0
libtpu: 0.0.40
codegen_flags: <defaults>
</compile_context>

<pallas_src>
import functools

import jax
import jax.numpy as jnp
import numpy as np
from jax.experimental import pallas as pl
from jax.experimental.pallas import tpu as pltpu


# ----------------------------------------------------------------------------
# Fused Pallas kernel: embeddings + num_layers LSTM + fc1 in one invocation
# ----------------------------------------------------------------------------
def _fused_embed_lstm_fc1_kernel(x_ref, wsin_ref, bsin_ref,
                                 wih0_ref, whh0_ref, b0_ref, *rest,
                                 num_layers, seq_len, hidden):
    # rest = [w1, b1, ..., w_{L-1}, b_{L-1}, fc_w, fc_b, h0, c0, o_ref]
    n_extra = 2 * (num_layers - 1)
    stk = rest[:n_extra]
    fcw_ref, fcb_ref, h0_ref, c0_ref, o_ref = rest[n_extra:]
    H = hidden

    # --- embedding_sin applied to each of the 6 feature columns (shared
    #     weights, exactly as the PyTorch forward) + concat along features.
    #     Done once, outside the recurrence.
    wsin = wsin_ref[...]                                   # (S, E)
    bsin = bsin_ref[...]                                   # (1, E)
    embs = [jnp.dot(x_ref[k], wsin, preferred_element_type=jnp.float32) + bsin
            for k in range(6)]
    seq_in = jnp.concatenate(embs, axis=1)                 # (T, 6E)

    # --- layer-0 input projection for ALL timesteps in one matmul, bias folded.
    xg0 = (jnp.dot(seq_in, wih0_ref[...], preferred_element_type=jnp.float32)
           + b0_ref[...])                                  # (T, 4H)

    whh0 = whh0_ref[...]                                   # (H, 4H)
    ws = [stk[2 * i][...] for i in range(num_layers - 1)]  # (2H, 4H) stacked
    bs = [stk[2 * i + 1][...] for i in range(num_layers - 1)]

    # Recurrent state for every layer, carried in vregs across the unrolled loop.
    hs = [h0_ref[l] for l in range(num_layers)]            # each (1, H)
    cs = [c0_ref[l] for l in range(num_layers)]

    def cell(gates, c_prev):
        # Two full-vreg transcendentals instead of four 32-lane ones.
        sg = jax.nn.sigmoid(gates)
        tg = jnp.tanh(gates)
        i_g = sg[:, 0:H]
        f_g = sg[:, H:2 * H]
        g_g = tg[:, 2 * H:3 * H]
        o_g = sg[:, 3 * H:4 * H]
        c_new = f_g * c_prev + i_g * g_g
        h_new = o_g * jnp.tanh(c_new)
        return h_new, c_new

    outs = []
    for t in range(seq_len):                               # fully unrolled (T tiny)
        # layer 0: x-side work was precomputed -> one MXU push on the serial path
        g = xg0[t:t + 1, :] + jnp.dot(hs[0], whh0,
                                      preferred_element_type=jnp.float32)
        hs[0], cs[0] = cell(g, cs[0])
        # layers >= 1: single MXU push on the concatenated [h_below, h_prev]
        for l in range(1, num_layers):
            xh = jnp.concatenate([hs[l - 1], hs[l]], axis=1)      # (1, 2H)
            g = (jnp.dot(xh, ws[l - 1], preferred_element_type=jnp.float32)
                 + bs[l - 1])
            hs[l], cs[l] = cell(g, cs[l])
        outs.append(hs[-1])

    # fc1 applied to every LSTM output step; only this (T, 1) result leaves VMEM.
    h_all = jnp.concatenate(outs, axis=0)                  # (T, H)
    o_ref[...] = (jnp.dot(h_all, fcw_ref[...],
                          preferred_element_type=jnp.float32) + fcb_ref[...])


# ----------------------------------------------------------------------------
# One-time parameter preparation (hoisted out of the per-call path)
# ----------------------------------------------------------------------------
def prepare_params(params, num_layers):
    p = {}
    p["w_sin_t"] = params["emb_sin_w"].T                           # (S, E)
    p["b_sin"] = params["emb_sin_b"].reshape(1, -1)                # (1, E)
    p["wih0_t"] = params["w_ih_0"].T                               # (6E, 4H)
    p["whh0_t"] = params["w_hh_0"].T                               # (H, 4H)
    p["b0"] = (params["b_ih_0"] + params["b_hh_0"]).reshape(1, -1)
    for l in range(1, num_layers):
        p[f"w{l}"] = jnp.concatenate(
            [params[f"w_ih_{l}"].T, params[f"w_hh_{l}"].T], axis=0)  # (2H, 4H)
        p[f"b{l}"] = (params[f"b_ih_{l}"] + params[f"b_hh_{l}"]).reshape(1, -1)
    p["fc1_w_t"] = params["fc1_w"].T                               # (H, 1)
    p["fc1_b"] = params["fc1_b"].reshape(1, 1)                     # (1, 1)
    return p


# ----------------------------------------------------------------------------
# Forward wrapper: one fused pallas_call, everything resident in VMEM
# ----------------------------------------------------------------------------
@functools.partial(jax.jit, static_argnames=("num_layers",))
def lstm_embedding_forward(x, prepped, h0, c0, num_layers):
    """x: (batch, input_size, >=6 features). Returns (batch, 1)."""
    B = x.shape[0]
    H = h0.shape[-1]
    # Feature-major view of the six embedded columns: (6, B, S)
    x_fm = jnp.transpose(x[:, :, :6], (2, 0, 1)).astype(jnp.float32)
    h0_k = h0.reshape(num_layers, 1, H).astype(jnp.float32)
    c0_k = c0.reshape(num_layers, 1, H).astype(jnp.float32)

    operands = [x_fm, prepped["w_sin_t"], prepped["b_sin"],
                prepped["wih0_t"], prepped["whh0_t"], prepped["b0"]]
    for l in range(1, num_layers):
        operands += [prepped[f"w{l}"], prepped[f"b{l}"]]
    operands += [prepped["fc1_w_t"], prepped["fc1_b"], h0_k, c0_k]

    kernel = functools.partial(_fused_embed_lstm_fc1_kernel,
                               num_layers=num_layers, seq_len=B, hidden=H)
    return pl.pallas_call(
        kernel,
        out_shape=jax.ShapeDtypeStruct((B, 1), jnp.float32),
        in_specs=[pl.BlockSpec(memory_space=pltpu.MemorySpace.VMEM)
                  for _ in operands],
        out_specs=pl.BlockSpec(memory_space=pltpu.MemorySpace.VMEM),
    )(*operands)


# ----------------------------------------------------------------------------
# Pure-JAX reference (mirrors the PyTorch forward) for the correctness check
# ----------------------------------------------------------------------------
def lstm_embedding_reference(x, params, h0, c0, num_layers):
    x = x.astype(jnp.float32)
    embs = [x[:, :, k] @ params["emb_sin_w"].T + params["emb_sin_b"]
            for k in range(6)]
    seq = jnp.concatenate(embs, axis=1)              # (T, 6E); T = batch dim of x
    T = seq.shape[0]
    H = h0.shape[-1]
    layer_in = seq
    for l in range(num_layers):
        w_ih = params[f"w_ih_{l}"]
        w_hh = params[f"w_hh_{l}"]
        b = params[f"b_ih_{l}"] + params[f"b_hh_{l}"]
        h = h0[l][None, :]
        c = c0[l][None, :]
        outs = []
        for t in range(T):
            g = layer_in[t:t + 1, :] @ w_ih.T + h @ w_hh.T + b
            i = jax.nn.sigmoid(g[:, 0:H])
            f = jax.nn.sigmoid(g[:, H:2 * H])
            gg = jnp.tanh(g[:, 2 * H:3 * H])
            o = jax.nn.sigmoid(g[:, 3 * H:4 * H])
            c = f * c + i * gg
            h = o * jnp.tanh(c)
            outs.append(h)
        layer_in = jnp.concatenate(outs, axis=0)     # (T, H)
    return layer_in @ params["fc1_w"].T + params["fc1_b"]   # (T, 1)


# ----------------------------------------------------------------------------
# Main
# ----------------------------------------------------------------------------
if __name__ == "__main__":
    input_size = 8        # == second dim of x (embedding in_features)
    hidden_size = 32
    num_layers = 2
    batch_size = 4        # becomes the (unbatched) LSTM sequence length
    embedding_size = 16
    num_features = 6

    key = jax.random.PRNGKey(0)
    ks = iter(jax.random.split(key, 64))

    # Deterministic PyTorch-style U(-k, k) parameter init.
    params = {}
    k_emb = 1.0 / np.sqrt(input_size)
    params["emb_sin_w"] = jax.random.uniform(
        next(ks), (embedding_size, input_size), jnp.float32, -k_emb, k_emb)
    params["emb_sin_b"] = jax.random.uniform(
        next(ks), (embedding_size,), jnp.float32, -k_emb, k_emb)
    k_lstm = 1.0 / np.sqrt(hidden_size)
    lstm_in = 6 * embedding_size
    for l in range(num_layers):
        d_in = lstm_in if l == 0 else hidden_size
        params[f"w_ih_{l}"] = jax.random.uniform(
            next(ks), (4 * hidden_size, d_in), jnp.float32, -k_lstm, k_lstm)
        params[f"w_hh_{l}"] = jax.random.uniform(
            next(ks), (4 * hidden_size, hidden_size), jnp.float32, -k_lstm, k_lstm)
        params[f"b_ih_{l}"] = jax.random.uniform(
            next(ks), (4 * hidden_size,), jnp.float32, -k_lstm, k_lstm)
        params[f"b_hh_{l}"] = jax.random.uniform(
            next(ks), (4 * hidden_size,), jnp.float32, -k_lstm, k_lstm)
    params["fc1_w"] = jax.random.uniform(
        next(ks), (1, hidden_size), jnp.float32, -k_lstm, k_lstm)
    params["fc1_b"] = jax.random.uniform(
        next(ks), (1,), jnp.float32, -k_lstm, k_lstm)

    # Inputs + deterministic float32 stand-ins for torch.randn(num_layers, H) f64.
    x = jax.random.normal(next(ks), (batch_size, input_size, num_features),
                          jnp.float32)
    h0 = jax.random.normal(next(ks), (num_layers, hidden_size), jnp.float32)
    c0 = jax.random.normal(next(ks), (num_layers, hidden_size), jnp.float32)

    prepped = prepare_params(params, num_layers)      # one-time param prep

    out = lstm_embedding_forward(x, prepped, h0, c0, num_layers)
    out = jax.block_until_ready(out)

    ref = lstm_embedding_reference(x, params, h0, c0, num_layers)
    np.testing.assert_allclose(np.asarray(out), np.asarray(ref),
                               rtol=2e-3, atol=2e-3)

    assert out.shape == (batch_size, 1)
    print("KERNEL_OK")
</pallas_src>

<mosaic_0001>
module attributes {stable_mosaic.version = 11 : i64} {
  func.func @_fused_embed_lstm_fc1_kernel(%arg0: memref<6x4x8xf32, #tpu.memory_space<vmem>>, %arg1: memref<8x16xf32, #tpu.memory_space<vmem>>, %arg2: memref<1x16xf32, #tpu.memory_space<vmem>>, %arg3: memref<96x128xf32, #tpu.memory_space<vmem>>, %arg4: memref<32x128xf32, #tpu.memory_space<vmem>>, %arg5: memref<1x128xf32, #tpu.memory_space<vmem>>, %arg6: memref<64x128xf32, #tpu.memory_space<vmem>>, %arg7: memref<1x128xf32, #tpu.memory_space<vmem>>, %arg8: memref<32x1xf32, #tpu.memory_space<vmem>>, %arg9: memref<1x1xf32, #tpu.memory_space<vmem>>, %arg10: memref<2x1x32xf32, #tpu.memory_space<vmem>>, %arg11: memref<2x1x32xf32, #tpu.memory_space<vmem>>, %arg12: memref<4x1xf32, #tpu.memory_space<vmem>>) attributes {dimension_semantics = [], scalar_prefetch = 0 : i64, scratch_operands = 0 : i64, tpu.core_type = #tpu.core_type<tc>} {
    %c0 = arith.constant 0 : index
    %c0_0 = arith.constant 0 : index
    %0 = vector.load %arg1[%c0, %c0_0] : memref<8x16xf32, #tpu.memory_space<vmem>>, vector<8x16xf32>
    %c0_1 = arith.constant 0 : index
    %c0_2 = arith.constant 0 : index
    %1 = vector.load %arg2[%c0_1, %c0_2] : memref<1x16xf32, #tpu.memory_space<vmem>>, vector<1x16xf32>
    %c0_3 = arith.constant 0 : index
    %c0_4 = arith.constant 0 : index
    %c0_5 = arith.constant 0 : index
    %2 = vector.load %arg0[%c0_3, %c0_4, %c0_5] : memref<6x4x8xf32, #tpu.memory_space<vmem>>, vector<1x4x8xf32>
    %3 = vector.shape_cast %2 : vector<1x4x8xf32> to vector<4x8xf32>
    %cst = arith.constant dense<0.000000e+00> : vector<4x16xf32>
    %4 = tpu.matmul %3, %0, %cst {dimension_numbers = #tpu.dot_dimension_numbers<[1], [0], [0], [1], [0, 0, 1, 1], [], []>} : vector<4x8xf32>, vector<8x16xf32>, vector<4x16xf32> -> vector<4x16xf32>
    %5 = vector.broadcast %1 : vector<1x16xf32> to vector<4x16xf32>
    %6 = arith.addf %4, %5 : vector<4x16xf32>
    %c1 = arith.constant 1 : index
    %c0_6 = arith.constant 0 : index
    %c0_7 = arith.constant 0 : index
    %7 = vector.load %arg0[%c1, %c0_6, %c0_7] : memref<6x4x8xf32, #tpu.memory_space<vmem>>, vector<1x4x8xf32>
    %8 = vector.shape_cast %7 : vector<1x4x8xf32> to vector<4x8xf32>
    %cst_8 = arith.constant dense<0.000000e+00> : vector<4x16xf32>
    %9 = tpu.matmul %8, %0, %cst_8 {dimension_numbers = #tpu.dot_dimension_numbers<[1], [0], [0], [1], [0, 0, 1, 1], [], []>} : vector<4x8xf32>, vector<8x16xf32>, vector<4x16xf32> -> vector<4x16xf32>
    %10 = vector.broadcast %1 : vector<1x16xf32> to vector<4x16xf32>
    %11 = arith.addf %9, %10 : vector<4x16xf32>
    %c2 = arith.constant 2 : index
    %c0_9 = arith.constant 0 : index
    %c0_10 = arith.constant 0 : index
    %12 = vector.load %arg0[%c2, %c0_9, %c0_10] : memref<6x4x8xf32, #tpu.memory_space<vmem>>, vector<1x4x8xf32>
    %13 = vector.shape_cast %12 : vector<1x4x8xf32> to vector<4x8xf32>
    %cst_11 = arith.constant dense<0.000000e+00> : vector<4x16xf32>
    %14 = tpu.matmul %13, %0, %cst_11 {dimension_numbers = #tpu.dot_dimension_numbers<[1], [0], [0], [1], [0, 0, 1, 1], [], []>} : vector<4x8xf32>, vector<8x16xf32>, vector<4x16xf32> -> vector<4x16xf32>
    %15 = vector.broadcast %1 : vector<1x16xf32> to vector<4x16xf32>
    %16 = arith.addf %14, %15 : vector<4x16xf32>
    %c3 = arith.constant 3 : index
    %c0_12 = arith.constant 0 : index
    %c0_13 = arith.constant 0 : index
    %17 = vector.load %arg0[%c3, %c0_12, %c0_13] : memref<6x4x8xf32, #tpu.memory_space<vmem>>, vector<1x4x8xf32>
    %18 = vector.shape_cast %17 : vector<1x4x8xf32> to vector<4x8xf32>
    %cst_14 = arith.constant dense<0.000000e+00> : vector<4x16xf32>
    %19 = tpu.matmul %18, %0, %cst_14 {dimension_numbers = #tpu.dot_dimension_numbers<[1], [0], [0], [1], [0, 0, 1, 1], [], []>} : vector<4x8xf32>, vector<8x16xf32>, vector<4x16xf32> -> vector<4x16xf32>
    %20 = vector.broadcast %1 : vector<1x16xf32> to vector<4x16xf32>
    %21 = arith.addf %19, %20 : vector<4x16xf32>
    %c4 = arith.constant 4 : index
    %c0_15 = arith.constant 0 : index
    %c0_16 = arith.constant 0 : index
    %22 = vector.load %arg0[%c4, %c0_15, %c0_16] : memref<6x4x8xf32, #tpu.memory_space<vmem>>, vector<1x4x8xf32>
    %23 = vector.shape_cast %22 : vector<1x4x8xf32> to vector<4x8xf32>
    %cst_17 = arith.constant dense<0.000000e+00> : vector<4x16xf32>
    %24 = tpu.matmul %23, %0, %cst_17 {dimension_numbers = #tpu.dot_dimension_numbers<[1], [0], [0], [1], [0, 0, 1, 1], [], []>} : vector<4x8xf32>, vector<8x16xf32>, vector<4x16xf32> -> vector<4x16xf32>
    %25 = vector.broadcast %1 : vector<1x16xf32> to vector<4x16xf32>
    %26 = arith.addf %24, %25 : vector<4x16xf32>
    %c5 = arith.constant 5 : index
    %c0_18 = arith.constant 0 : index
    %c0_19 = arith.constant 0 : index
    %27 = vector.load %arg0[%c5, %c0_18, %c0_19] : memref<6x4x8xf32, #tpu.memory_space<vmem>>, vector<1x4x8xf32>
    %28 = vector.shape_cast %27 : vector<1x4x8xf32> to vector<4x8xf32>
    %cst_20 = arith.constant dense<0.000000e+00> : vector<4x16xf32>
    %29 = tpu.matmul %28, %0, %cst_20 {dimension_numbers = #tpu.dot_dimension_numbers<[1], [0], [0], [1], [0, 0, 1, 1], [], []>} : vector<4x8xf32>, vector<8x16xf32>, vector<4x16xf32> -> vector<4x16xf32>
    %30 = vector.broadcast %1 : vector<1x16xf32> to vector<4x16xf32>
    %31 = arith.addf %29, %30 : vector<4x16xf32>
    %32 = tpu.concatenate %6, %11, %16, %21, %26, %31 in 1 : vector<4x16xf32>, vector<4x16xf32>, vector<4x16xf32>, vector<4x16xf32>, vector<4x16xf32>, vector<4x16xf32> -> vector<4x96xf32>
    %c0_21 = arith.constant 0 : index
    %c0_22 = arith.constant 0 : index
    %33 = vector.load %arg3[%c0_21, %c0_22] : memref<96x128xf32, #tpu.memory_space<vmem>>, vector<96x128xf32>
    %cst_23 = arith.constant dense<0.000000e+00> : vector<4x128xf32>
    %34 = tpu.matmul %32, %33, %cst_23 {dimension_numbers = #tpu.dot_dimension_numbers<[1], [0], [0], [1], [0, 0, 1, 1], [], []>} : vector<4x96xf32>, vector<96x128xf32>, vector<4x128xf32> -> vector<4x128xf32>
    %c0_24 = arith.constant 0 : index
    %c0_25 = arith.constant 0 : index
    %35 = vector.load %arg5[%c0_24, %c0_25] : memref<1x128xf32, #tpu.memory_space<vmem>>, vector<1x128xf32>
    %36 = vector.broadcast %35 : vector<1x128xf32> to vector<4x128xf32>
    %37 = arith.addf %34, %36 : vector<4x128xf32>
    %c0_26 = arith.constant 0 : index
    %c0_27 = arith.constant 0 : index
    %38 = vector.load %arg4[%c0_26, %c0_27] : memref<32x128xf32, #tpu.memory_space<vmem>>, vector<32x128xf32>
    %c0_28 = arith.constant 0 : index
    %c0_29 = arith.constant 0 : index
    %39 = vector.load %arg6[%c0_28, %c0_29] : memref<64x128xf32, #tpu.memory_space<vmem>>, vector<64x128xf32>
    %c0_30 = arith.constant 0 : index
    %c0_31 = arith.constant 0 : index
    %40 = vector.load %arg7[%c0_30, %c0_31] : memref<1x128xf32, #tpu.memory_space<vmem>>, vector<1x128xf32>
    %c0_32 = arith.constant 0 : index
    %c0_33 = arith.constant 0 : index
    %c0_34 = arith.constant 0 : index
    %41 = vector.load %arg10[%c0_32, %c0_33, %c0_34] : memref<2x1x32xf32, #tpu.memory_space<vmem>>, vector<1x1x32xf32>
    %42 = vector.shape_cast %41 : vector<1x1x32xf32> to vector<1x32xf32>
    %c1_35 = arith.constant 1 : index
    %c0_36 = arith.constant 0 : index
    %c0_37 = arith.constant 0 : index
    %43 = vector.load %arg10[%c1_35, %c0_36, %c0_37] : memref<2x1x32xf32, #tpu.memory_space<vmem>>, vector<1x1x32xf32>
    %44 = vector.shape_cast %43 : vector<1x1x32xf32> to vector<1x32xf32>
    %c0_38 = arith.constant 0 : index
    %c0_39 = arith.constant 0 : index
    %c0_40 = arith.constant 0 : index
    %45 = vector.load %arg11[%c0_38, %c0_39, %c0_40] : memref<2x1x32xf32, #tpu.memory_space<vmem>>, vector<1x1x32xf32>
    %46 = vector.shape_cast %45 : vector<1x1x32xf32> to vector<1x32xf32>
    %c1_41 = arith.constant 1 : index
    %c0_42 = arith.constant 0 : index
    %c0_43 = arith.constant 0 : index
    %47 = vector.load %arg11[%c1_41, %c0_42, %c0_43] : memref<2x1x32xf32, #tpu.memory_space<vmem>>, vector<1x1x32xf32>
    %48 = vector.shape_cast %47 : vector<1x1x32xf32> to vector<1x32xf32>
    %49 = vector.extract_strided_slice %37 {offsets = [0, 0], sizes = [1, 128], strides = [1, 1]} : vector<4x128xf32> to vector<1x128xf32>
    %cst_44 = arith.constant dense<0.000000e+00> : vector<1x128xf32>
    %50 = tpu.matmul %42, %38, %cst_44 {dimension_numbers = #tpu.dot_dimension_numbers<[1], [0], [0], [1], [0, 0, 1, 1], [], []>} : vector<1x32xf32>, vector<32x128xf32>, vector<1x128xf32> -> vector<1x128xf32>
    %51 = arith.addf %49, %50 : vector<1x128xf32>
    %52 = arith.negf %51 : vector<1x128xf32>
    %53 = math.exp %52 : vector<1x128xf32>
    %cst_45 = arith.constant 1.000000e+00 : f32
    %54 = vector.broadcast %cst_45 : f32 to vector<1x128xf32>
    %55 = arith.addf %54, %53 : vector<1x128xf32>
    %56 = arith.divf %54, %55 : vector<1x128xf32>
    %57 = math.tanh %51 : vector<1x128xf32>
    %58 = vector.extract_strided_slice %56 {offsets = [0, 0], sizes = [1, 32], strides = [1, 1]} : vector<1x128xf32> to vector<1x32xf32>
    %59 = vector.extract_strided_slice %56 {offsets = [0, 32], sizes = [1, 32], strides = [1, 1]} : vector<1x128xf32> to vector<1x32xf32>
    %60 = vector.extract_strided_slice %57 {offsets = [0, 64], sizes = [1, 32], strides = [1, 1]} : vector<1x128xf32> to vector<1x32xf32>
    %61 = vector.extract_strided_slice %56 {offsets = [0, 96], sizes = [1, 32], strides = [1, 1]} : vector<1x128xf32> to vector<1x32xf32>
    %62 = arith.mulf %59, %46 : vector<1x32xf32>
    %63 = arith.mulf %58, %60 : vector<1x32xf32>
    %64 = arith.addf %62, %63 : vector<1x32xf32>
    %65 = math.tanh %64 : vector<1x32xf32>
    %66 = arith.mulf %61, %65 : vector<1x32xf32>
    %67 = tpu.concatenate %66, %44 in 1 : vector<1x32xf32>, vector<1x32xf32> -> vector<1x64xf32>
    %cst_46 = arith.constant dense<0.000000e+00> : vector<1x128xf32>
    %68 = tpu.matmul %67, %39, %cst_46 {dimension_numbers = #tpu.dot_dimension_numbers<[1], [0], [0], [1], [0, 0, 1, 1], [], []>} : vector<1x64xf32>, vector<64x128xf32>, vector<1x128xf32> -> vector<1x128xf32>
    %69 = arith.addf %68, %40 : vector<1x128xf32>
    %70 = arith.negf %69 : vector<1x128xf32>
    %71 = math.exp %70 : vector<1x128xf32>
    %cst_47 = arith.constant 1.000000e+00 : f32
    %72 = vector.broadcast %cst_47 : f32 to vector<1x128xf32>
    %73 = arith.addf %72, %71 : vector<1x128xf32>
    %74 = arith.divf %72, %73 : vector<1x128xf32>
    %75 = math.tanh %69 : vector<1x128xf32>
    %76 = vector.extract_strided_slice %74 {offsets = [0, 0], sizes = [1, 32], strides = [1, 1]} : vector<1x128xf32> to vector<1x32xf32>
    %77 = vector.extract_strided_slice %74 {offsets = [0, 32], sizes = [1, 32], strides = [1, 1]} : vector<1x128xf32> to vector<1x32xf32>
    %78 = vector.extract_strided_slice %75 {offsets = [0, 64], sizes = [1, 32], strides = [1, 1]} : vector<1x128xf32> to vector<1x32xf32>
    %79 = vector.extract_strided_slice %74 {offsets = [0, 96], sizes = [1, 32], strides = [1, 1]} : vector<1x128xf32> to vector<1x32xf32>
    %80 = arith.mulf %77, %48 : vector<1x32xf32>
    %81 = arith.mulf %76, %78 : vector<1x32xf32>
    %82 = arith.addf %80, %81 : vector<1x32xf32>
    %83 = math.tanh %82 : vector<1x32xf32>
    %84 = arith.mulf %79, %83 : vector<1x32xf32>
    %85 = vector.extract_strided_slice %37 {offsets = [1, 0], sizes = [1, 128], strides = [1, 1]} : vector<4x128xf32> to vector<1x128xf32>
    %cst_48 = arith.constant dense<0.000000e+00> : vector<1x128xf32>
    %86 = tpu.matmul %66, %38, %cst_48 {dimension_numbers = #tpu.dot_dimension_numbers<[1], [0], [0], [1], [0, 0, 1, 1], [], []>} : vector<1x32xf32>, vector<32x128xf32>, vector<1x128xf32> -> vector<1x128xf32>
    %87 = arith.addf %85, %86 : vector<1x128xf32>
    %88 = arith.negf %87 : vector<1x128xf32>
    %89 = math.exp %88 : vector<1x128xf32>
    %cst_49 = arith.constant 1.000000e+00 : f32
    %90 = vector.broadcast %cst_49 : f32 to vector<1x128xf32>
    %91 = arith.addf %90, %89 : vector<1x128xf32>
    %92 = arith.divf %90, %91 : vector<1x128xf32>
    %93 = math.tanh %87 : vector<1x128xf32>
    %94 = vector.extract_strided_slice %92 {offsets = [0, 0], sizes = [1, 32], strides = [1, 1]} : vector<1x128xf32> to vector<1x32xf32>
    %95 = vector.extract_strided_slice %92 {offsets = [0, 32], sizes = [1, 32], strides = [1, 1]} : vector<1x128xf32> to vector<1x32xf32>
    %96 = vector.extract_strided_slice %93 {offsets = [0, 64], sizes = [1, 32], strides = [1, 1]} : vector<1x128xf32> to vector<1x32xf32>
    %97 = vector.extract_strided_slice %92 {offsets = [0, 96], sizes = [1, 32], strides = [1, 1]} : vector<1x128xf32> to vector<1x32xf32>
    %98 = arith.mulf %95, %64 : vector<1x32xf32>
    %99 = arith.mulf %94, %96 : vector<1x32xf32>
    %100 = arith.addf %98, %99 : vector<1x32xf32>
    %101 = math.tanh %100 : vector<1x32xf32>
    %102 = arith.mulf %97, %101 : vector<1x32xf32>
    %103 = tpu.concatenate %102, %84 in 1 : vector<1x32xf32>, vector<1x32xf32> -> vector<1x64xf32>
    %cst_50 = arith.constant dense<0.000000e+00> : vector<1x128xf32>
    %104 = tpu.matmul %103, %39, %cst_50 {dimension_numbers = #tpu.dot_dimension_numbers<[1], [0], [0], [1], [0, 0, 1, 1], [], []>} : vector<1x64xf32>, vector<64x128xf32>, vector<1x128xf32> -> vector<1x128xf32>
    %105 = arith.addf %104, %40 : vector<1x128xf32>
    %106 = arith.negf %105 : vector<1x128xf32>
    %107 = math.exp %106 : vector<1x128xf32>
    %cst_51 = arith.constant 1.000000e+00 : f32
    %108 = vector.broadcast %cst_51 : f32 to vector<1x128xf32>
    %109 = arith.addf %108, %107 : vector<1x128xf32>
    %110 = arith.divf %108, %109 : vector<1x128xf32>
    %111 = math.tanh %105 : vector<1x128xf32>
    %112 = vector.extract_strided_slice %110 {offsets = [0, 0], sizes = [1, 32], strides = [1, 1]} : vector<1x128xf32> to vector<1x32xf32>
    %113 = vector.extract_strided_slice %110 {offsets = [0, 32], sizes = [1, 32], strides = [1, 1]} : vector<1x128xf32> to vector<1x32xf32>
    %114 = vector.extract_strided_slice %111 {offsets = [0, 64], sizes = [1, 32], strides = [1, 1]} : vector<1x128xf32> to vector<1x32xf32>
    %115 = vector.extract_strided_slice %110 {offsets = [0, 96], sizes = [1, 32], strides = [1, 1]} : vector<1x128xf32> to vector<1x32xf32>
    %116 = arith.mulf %113, %82 : vector<1x32xf32>
    %117 = arith.mulf %112, %114 : vector<1x32xf32>
    %118 = arith.addf %116, %117 : vector<1x32xf32>
    %119 = math.tanh %118 : vector<1x32xf32>
    %120 = arith.mulf %115, %119 : vector<1x32xf32>
    %121 = vector.extract_strided_slice %37 {offsets = [2, 0], sizes = [1, 128], strides = [1, 1]} : vector<4x128xf32> to vector<1x128xf32>
    %cst_52 = arith.constant dense<0.000000e+00> : vector<1x128xf32>
    %122 = tpu.matmul %102, %38, %cst_52 {dimension_numbers = #tpu.dot_dimension_numbers<[1], [0], [0], [1], [0, 0, 1, 1], [], []>} : vector<1x32xf32>, vector<32x128xf32>, vector<1x128xf32> -> vector<1x128xf32>
    %123 = arith.addf %121, %122 : vector<1x128xf32>
    %124 = arith.negf %123 : vector<1x128xf32>
    %125 = math.exp %124 : vector<1x128xf32>
    %cst_53 = arith.constant 1.000000e+00 : f32
    %126 = vector.broadcast %cst_53 : f32 to vector<1x128xf32>
    %127 = arith.addf %126, %125 : vector<1x128xf32>
    %128 = arith.divf %126, %127 : vector<1x128xf32>
    %129 = math.tanh %123 : vector<1x128xf32>
    %130 = vector.extract_strided_slice %128 {offsets = [0, 0], sizes = [1, 32], strides = [1, 1]} : vector<1x128xf32> to vector<1x32xf32>
    %131 = vector.extract_strided_slice %128 {offsets = [0, 32], sizes = [1, 32], strides = [1, 1]} : vector<1x128xf32> to vector<1x32xf32>
    %132 = vector.extract_strided_slice %129 {offsets = [0, 64], sizes = [1, 32], strides = [1, 1]} : vector<1x128xf32> to vector<1x32xf32>
    %133 = vector.extract_strided_slice %128 {offsets = [0, 96], sizes = [1, 32], strides = [1, 1]} : vector<1x128xf32> to vector<1x32xf32>
    %134 = arith.mulf %131, %100 : vector<1x32xf32>
    %135 = arith.mulf %130, %132 : vector<1x32xf32>
    %136 = arith.addf %134, %135 : vector<1x32xf32>
    %137 = math.tanh %136 : vector<1x32xf32>
    %138 = arith.mulf %133, %137 : vector<1x32xf32>
    %139 = tpu.concatenate %138, %120 in 1 : vector<1x32xf32>, vector<1x32xf32> -> vector<1x64xf32>
    %cst_54 = arith.constant dense<0.000000e+00> : vector<1x128xf32>
    %140 = tpu.matmul %139, %39, %cst_54 {dimension_numbers = #tpu.dot_dimension_numbers<[1], [0], [0], [1], [0, 0, 1, 1], [], []>} : vector<1x64xf32>, vector<64x128xf32>, vector<1x128xf32> -> vector<1x128xf32>
    %141 = arith.addf %140, %40 : vector<1x128xf32>
    %142 = arith.negf %141 : vector<1x128xf32>
    %143 = math.exp %142 : vector<1x128xf32>
    %cst_55 = arith.constant 1.000000e+00 : f32
    %144 = vector.broadcast %cst_55 : f32 to vector<1x128xf32>
    %145 = arith.addf %144, %143 : vector<1x128xf32>
    %146 = arith.divf %144, %145 : vector<1x128xf32>
    %147 = math.tanh %141 : vector<1x128xf32>
    %148 = vector.extract_strided_slice %146 {offsets = [0, 0], sizes = [1, 32], strides = [1, 1]} : vector<1x128xf32> to vector<1x32xf32>
    %149 = vector.extract_strided_slice %146 {offsets = [0, 32], sizes = [1, 32], strides = [1, 1]} : vector<1x128xf32> to vector<1x32xf32>
    %150 = vector.extract_strided_slice %147 {offsets = [0, 64], sizes = [1, 32], strides = [1, 1]} : vector<1x128xf32> to vector<1x32xf32>
    %151 = vector.extract_strided_slice %146 {offsets = [0, 96], sizes = [1, 32], strides = [1, 1]} : vector<1x128xf32> to vector<1x32xf32>
    %152 = arith.mulf %149, %118 : vector<1x32xf32>
    %153 = arith.mulf %148, %150 : vector<1x32xf32>
    %154 = arith.addf %152, %153 : vector<1x32xf32>
    %155 = math.tanh %154 : vector<1x32xf32>
    %156 = arith.mulf %151, %155 : vector<1x32xf32>
    %157 = vector.extract_strided_slice %37 {offsets = [3, 0], sizes = [1, 128], strides = [1, 1]} : vector<4x128xf32> to vector<1x128xf32>
    %cst_56 = arith.constant dense<0.000000e+00> : vector<1x128xf32>
    %158 = tpu.matmul %138, %38, %cst_56 {dimension_numbers = #tpu.dot_dimension_numbers<[1], [0], [0], [1], [0, 0, 1, 1], [], []>} : vector<1x32xf32>, vector<32x128xf32>, vector<1x128xf32> -> vector<1x128xf32>
    %159 = arith.addf %157, %158 : vector<1x128xf32>
    %160 = arith.negf %159 : vector<1x128xf32>
    %161 = math.exp %160 : vector<1x128xf32>
    %cst_57 = arith.constant 1.000000e+00 : f32
    %162 = vector.broadcast %cst_57 : f32 to vector<1x128xf32>
    %163 = arith.addf %162, %161 : vector<1x128xf32>
    %164 = arith.divf %162, %163 : vector<1x128xf32>
    %165 = math.tanh %159 : vector<1x128xf32>
    %166 = vector.extract_strided_slice %164 {offsets = [0, 0], sizes = [1, 32], strides = [1, 1]} : vector<1x128xf32> to vector<1x32xf32>
    %167 = vector.extract_strided_slice %164 {offsets = [0, 32], sizes = [1, 32], strides = [1, 1]} : vector<1x128xf32> to vector<1x32xf32>
    %168 = vector.extract_strided_slice %165 {offsets = [0, 64], sizes = [1, 32], strides = [1, 1]} : vector<1x128xf32> to vector<1x32xf32>
    %169 = vector.extract_strided_slice %164 {offsets = [0, 96], sizes = [1, 32], strides = [1, 1]} : vector<1x128xf32> to vector<1x32xf32>
    %170 = arith.mulf %167, %136 : vector<1x32xf32>
    %171 = arith.mulf %166, %168 : vector<1x32xf32>
    %172 = arith.addf %170, %171 : vector<1x32xf32>
    %173 = math.tanh %172 : vector<1x32xf32>
    %174 = arith.mulf %169, %173 : vector<1x32xf32>
    %175 = tpu.concatenate %174, %156 in 1 : vector<1x32xf32>, vector<1x32xf32> -> vector<1x64xf32>
    %cst_58 = arith.constant dense<0.000000e+00> : vector<1x128xf32>
    %176 = tpu.matmul %175, %39, %cst_58 {dimension_numbers = #tpu.dot_dimension_numbers<[1], [0], [0], [1], [0, 0, 1, 1], [], []>} : vector<1x64xf32>, vector<64x128xf32>, vector<1x128xf32> -> vector<1x128xf32>
    %177 = arith.addf %176, %40 : vector<1x128xf32>
    %178 = arith.negf %177 : vector<1x128xf32>
    %179 = math.exp %178 : vector<1x128xf32>
    %cst_59 = arith.constant 1.000000e+00 : f32
    %180 = vector.broadcast %cst_59 : f32 to vector<1x128xf32>
    %181 = arith.addf %180, %179 : vector<1x128xf32>
    %182 = arith.divf %180, %181 : vector<1x128xf32>
    %183 = math.tanh %177 : vector<1x128xf32>
    %184 = vector.extract_strided_slice %182 {offsets = [0, 0], sizes = [1, 32], strides = [1, 1]} : vector<1x128xf32> to vector<1x32xf32>
    %185 = vector.extract_strided_slice %182 {offsets = [0, 32], sizes = [1, 32], strides = [1, 1]} : vector<1x128xf32> to vector<1x32xf32>
    %186 = vector.extract_strided_slice %183 {offsets = [0, 64], sizes = [1, 32], strides = [1, 1]} : vector<1x128xf32> to vector<1x32xf32>
    %187 = vector.extract_strided_slice %182 {offsets = [0, 96], sizes = [1, 32], strides = [1, 1]} : vector<1x128xf32> to vector<1x32xf32>
    %188 = arith.mulf %185, %154 : vector<1x32xf32>
    %189 = arith.mulf %184, %186 : vector<1x32xf32>
    %190 = arith.addf %188, %189 : vector<1x32xf32>
    %191 = math.tanh %190 : vector<1x32xf32>
    %192 = arith.mulf %187, %191 : vector<1x32xf32>
    %193 = tpu.concatenate %84, %120, %156, %192 in 0 : vector<1x32xf32>, vector<1x32xf32>, vector<1x32xf32>, vector<1x32xf32> -> vector<4x32xf32>
    %c0_60 = arith.constant 0 : index
    %c0_61 = arith.constant 0 : index
    %194 = vector.load %arg8[%c0_60, %c0_61] : memref<32x1xf32, #tpu.memory_space<vmem>>, vector<32x1xf32>
    %cst_62 = arith.constant dense<0.000000e+00> : vector<4x1xf32>
    %195 = tpu.matmul %193, %194, %cst_62 {dimension_numbers = #tpu.dot_dimension_numbers<[1], [0], [0], [1], [0, 0, 1, 1], [], []>} : vector<4x32xf32>, vector<32x1xf32>, vector<4x1xf32> -> vector<4x1xf32>
    %c0_63 = arith.constant 0 : index
    %c0_64 = arith.constant 0 : index
    %196 = vector.load %arg9[%c0_63, %c0_64] : memref<1x1xf32, #tpu.memory_space<vmem>>, vector<1x1xf32>
    %197 = vector.broadcast %196 : vector<1x1xf32> to vector<4x1xf32>
    %198 = arith.addf %195, %197 : vector<4x1xf32>
    %c0_65 = arith.constant 0 : index
    %c0_66 = arith.constant 0 : index
    %199 = vector.load %arg12[%c0_65, %c0_66] : memref<4x1xf32, #tpu.memory_space<vmem>>, vector<4x1xf32>
    tpu.vector_store %arg12[%c0_65, %c0_66], %198 {strides = array<i32>} : memref<4x1xf32, #tpu.memory_space<vmem>>, vector<4x1xf32>,
    return
  }
}

</mosaic_0001>

<llo_original>
// kernel: lstm_embedding_forward.1
$region0: #{lstm_embedding_forward.1}
  #allocation0 [shape = 'u32[]', space=smem, size = 0x4, offset = 0x4, fixed_abs, tag = 'smem constant byte address 0x4 - core index']
  #allocation1 [shape = 'u32[144,128]{1,0:T(1,128)}', space=vmem, size = 0x12000, scoped, tag = 'internal scratch']
  #allocation2 [shape = 'f32[1,1]{1,0:T(1,128)S(1)}', space=vmem, size = 0x200, scoped, tag = 'scoped memory for lstm_embedding_forward.1']
  %s0 = inlined_call_operand.hbm [shape: f32[6,4,8], index: 0, kind: input, shape index: {}]
  %s1 = inlined_call_operand.hbm [shape: f32[8,16], index: 1, kind: input, shape index: {}]
  %s2 = inlined_call_operand.vmem [shape: f32[1,16], index: 2, kind: input, shape index: {}]
  %s3 = inlined_call_operand.hbm [shape: f32[96,128], index: 3, kind: input, shape index: {}]
  %s4 = inlined_call_operand.hbm [shape: f32[32,128], index: 4, kind: input, shape index: {}]
  %s5 = inlined_call_operand.hbm [shape: f32[1,128], index: 5, kind: input, shape index: {}]
  %s6 = inlined_call_operand.vmem [shape: f32[64,128], index: 6, kind: input, shape index: {}]
  %s7 = inlined_call_operand.hbm [shape: f32[1,128], index: 7, kind: input, shape index: {}]
  %s8 = inlined_call_operand.vmem [shape: f32[32,1], index: 8, kind: input, shape index: {}]
  %s9 = inlined_call_operand.<no memory space> [shape: f32[1,1], index: 9, kind: input, shape index: {}]
  %s10 = inlined_call_operand.vmem [shape: f32[2,1,32], index: 10, kind: input, shape index: {}]
  %s11 = inlined_call_operand.vmem [shape: f32[2,1,32], index: 11, kind: input, shape index: {}]
  %s12 = inlined_call_operand.vmem [shape: f32[4,1], index: 12, kind: output, shape index: {}]
  %s13 = sld [smem:[#allocation0]]
  $region82: #{lstm_embedding_forward.1} parent=0
    _
  %s15 = ssub.s32 1, %s13
  %s16 = scalar_select 0, %s15, %s13
  %v17 = vstv %s9
  %18 = vst [vmem:[#allocation2] sm:$0x1] %v17
  $region1: #{lstm_embedding_forward.1} parent=0
    #allocation3 [shape = 'u8[12288]{0}', space=vmem, size = 0x3000, scoped, tag = 'input window, operand 0, single buffered']
    #allocation4 [shape = 's32[1]{0}', space=sflag, size = 0x4, scoped, tag = 'scoped memory for lstm_embedding_forward.1']
    #allocation5 [shape = 'u8[4096]{0}', space=vmem, size = 0x1000, scoped, tag = 'input window, operand 1, single buffered']
    #allocation6 [shape = 's32[1]{0}', space=sflag, size = 0x4, scoped, tag = 'scoped memory for lstm_embedding_forward.1']
    #allocation7 [shape = 'u8[49152]{0}', space=vmem, size = 0xc000, scoped, tag = 'input window, operand 3, single buffered']
    #allocation8 [shape = 'u8[16384]{0}', space=vmem, size = 0x4000, scoped, tag = 'input window, operand 4, single buffered']
    #allocation9 [shape = 's32[1]{0}', space=sflag, size = 0x4, scoped, tag = 'scoped memory for lstm_embedding_forward.1']
    #allocation10 [shape = 'u8[512]{0}', space=vmem, size = 0x400, scoped, tag = 'input window, operand 5, single buffered']
    #allocation11 [shape = 'u8[512]{0}', space=vmem, size = 0x400, scoped, tag = 'input window, operand 7, single buffered']
    #allocation12 [shape = 's32[1]{0}', space=sflag, size = 0x4, scoped, tag = 'scoped memory for lstm_embedding_forward.1']
    %19 = vsyncpa [#allocation4], 0
    %20 = vsyncpa [#allocation6], 0
    %21 = vsyncpa [#allocation9], 0
    %22 = vsyncpa [#allocation12], 0
    // Predicated region
    $region2: #{lstm_embedding_forward.1} parent=1 // pred_check
      _
    $region3: #{lstm_embedding_forward.1} parent=1 // pred_check_branch
      %24 = sbr.rel (0) target = $region5
    $region4: #{lstm_embedding_forward.1} parent=1 // pred_region
      %s26 = ssub.s32 384, 384
      %27 = vsyncadd [#allocation4], %s26
      %s28 = sshll.u32 [#allocation3], 4
      %s29 = int_to_ptr.vmem [resolvable:$true] %s28
      %34 = dma.hbm_to_vmem [thread:$0]  %s0, 384, %s29, [#allocation4], 64, 64, 4
    $region5: #{lstm_embedding_forward.1} parent=1 // pred_fallthru
      _
    // Predicated region
    $region6: #{lstm_embedding_forward.1} parent=1 // pred_check
      _
    $region7: #{lstm_embedding_forward.1} parent=1 // pred_check_branch
      %36 = sbr.rel (0) target = $region9
    $region8: #{lstm_embedding_forward.1} parent=1 // pred_region
      %s38 = ssub.s32 128, 128
      %39 = vsyncadd [#allocation6], %s38
      %s41 = sshll.u32 [#allocation5], 4
      %s42 = int_to_ptr.vmem [resolvable:$true] %s41
      %44 = dma.hbm_to_vmem [thread:$0]  %s1, 128, %s42, [#allocation6]
    $region9: #{lstm_embedding_forward.1} parent=1 // pred_fallthru
      _
    // Predicated region
    $region10: #{lstm_embedding_forward.1} parent=1 // pred_check
      _
    $region11: #{lstm_embedding_forward.1} parent=1 // pred_check_branch
      %46 = sbr.rel (0) target = $region13
    $region12: #{lstm_embedding_forward.1} parent=1 // pred_region
      _
    $region13: #{lstm_embedding_forward.1} parent=1 // pred_fallthru
      _
    // Predicated region
    $region14: #{lstm_embedding_forward.1} parent=1 // pred_check
      _
    $region15: #{lstm_embedding_forward.1} parent=1 // pred_check_branch
      %48 = sbr.rel (0) target = $region17
    $region16: #{lstm_embedding_forward.1} parent=1 // pred_region
      %s50 = ssub.s32 1536, 1536
      %51 = vsyncadd [#allocation6], %s50
      %s52 = sshll.u32 [#allocation7], 4
      %s53 = int_to_ptr.vmem [resolvable:$true] %s52
      %58 = dma.hbm_to_vmem [thread:$0]  %s3, 1536, %s53, [#allocation6], 128, 128, 8
    $region17: #{lstm_embedding_forward.1} parent=1 // pred_fallthru
      _
    // Predicated region
    $region18: #{lstm_embedding_forward.1} parent=1 // pred_check
      _
    $region19: #{lstm_embedding_forward.1} parent=1 // pred_check_branch
      %60 = sbr.rel (0) target = $region21
    $region20: #{lstm_embedding_forward.1} parent=1 // pred_region
      %s62 = ssub.s32 512, 512
      %63 = vsyncadd [#allocation9], %s62
      %s64 = sshll.u32 [#allocation8], 4
      %s65 = int_to_ptr.vmem [resolvable:$true] %s64
      %70 = dma.hbm_to_vmem [thread:$0]  %s4, 512, %s65, [#allocation9], 128, 128, 8
    $region21: #{lstm_embedding_forward.1} parent=1 // pred_fallthru
      _
    // Predicated region
    $region22: #{lstm_embedding_forward.1} parent=1 // pred_check
      _
    $region23: #{lstm_embedding_forward.1} parent=1 // pred_check_branch
      %72 = sbr.rel (0) target = $region25
    $region24: #{lstm_embedding_forward.1} parent=1 // pred_region
      %s74 = ssub.s32 16, 16
      %75 = vsyncadd [#allocation9], %s74
      %s77 = sshll.u32 [#allocation10], 4
      %s78 = int_to_ptr.vmem [resolvable:$true] %s77
      %80 = dma.hbm_to_vmem [thread:$0]  %s5, 16, %s78, [#allocation9]
    $region25: #{lstm_embedding_forward.1} parent=1 // pred_fallthru
      _
    // Predicated region
    $region26: #{lstm_embedding_forward.1} parent=1 // pred_check
      _
    $region27: #{lstm_embedding_forward.1} parent=1 // pred_check_branch
      %82 = sbr.rel (0) target = $region29
    $region28: #{lstm_embedding_forward.1} parent=1 // pred_region
      _
    $region29: #{lstm_embedding_forward.1} parent=1 // pred_fallthru
      _
    // Predicated region
    $region30: #{lstm_embedding_forward.1} parent=1 // pred_check
      _
    $region31: #{lstm_embedding_forward.1} parent=1 // pred_check_branch
      %84 = sbr.rel (0) target = $region33
    $region32: #{lstm_embedding_forward.1} parent=1 // pred_region
      %s86 = ssub.s32 16, 16
      %87 = vsyncadd [#allocation12], %s86
      %s89 = sshll.u32 [#allocation11], 4
      %s90 = int_to_ptr.vmem [resolvable:$true] %s89
      %92 = dma.hbm_to_vmem [thread:$0]  %s7, 16, %s90, [#allocation12]
    $region33: #{lstm_embedding_forward.1} parent=1 // pred_fallthru
      _
    // Predicated region
    $region34: #{lstm_embedding_forward.1} parent=1 // pred_check
      _
    $region35: #{lstm_embedding_forward.1} parent=1 // pred_check_branch
      %94 = sbr.rel (0) target = $region37
    $region36: #{lstm_embedding_forward.1} parent=1 // pred_region
      _
    $region37: #{lstm_embedding_forward.1} parent=1 // pred_fallthru
      _
    // Predicated region
    $region38: #{lstm_embedding_forward.1} parent=1 // pred_check
      _
    $region39: #{lstm_embedding_forward.1} parent=1 // pred_check_branch
      %96 = sbr.rel (0) target = $region41
    $region40: #{lstm_embedding_forward.1} parent=1 // pred_region
      _
    $region41: #{lstm_embedding_forward.1} parent=1 // pred_fallthru
      _
    // Predicated region
    $region42: #{lstm_embedding_forward.1} parent=1 // pred_check
      _
    $region43: #{lstm_embedding_forward.1} parent=1 // pred_check_branch
      %98 = sbr.rel (0) target = $region45
    $region44: #{lstm_embedding_forward.1} parent=1 // pred_region
      _
    $region45: #{lstm_embedding_forward.1} parent=1 // pred_fallthru
      _
    // Predicated region
    $region46: #{lstm_embedding_forward.1} parent=1 // pred_check
      _
    $region47: #{lstm_embedding_forward.1} parent=1 // pred_check_branch
      %100 = sbr.rel (0) target = $region49
    $region48: #{lstm_embedding_forward.1} parent=1 // pred_region
      _
    $region49: #{lstm_embedding_forward.1} parent=1 // pred_fallthru
      _
    // Predicated region
    $region50: #{lstm_embedding_forward.1} parent=1 // pred_check
      _
    $region51: #{lstm_embedding_forward.1} parent=1 // pred_check_branch
      %102 = sbr.rel (0) target = $region53
    $region52: #{lstm_embedding_forward.1} parent=1 // pred_region
      %103 = dma.done [#allocation4], 384
    $region53: #{lstm_embedding_forward.1} parent=1 // pred_fallthru
      _
    // Predicated region
    $region54: #{lstm_embedding_forward.1} parent=1 // pred_check
      _
    $region55: #{lstm_embedding_forward.1} parent=1 // pred_check_branch
      %105 = sbr.rel (0) target = $region57
    $region56: #{lstm_embedding_forward.1} parent=1 // pred_region
      %106 = dma.done [#allocation6], 128
    $region57: #{lstm_embedding_forward.1} parent=1 // pred_fallthru
      _
    // Predicated region
    $region58: #{lstm_embedding_forward.1} parent=1 // pred_check
      _
    $region59: #{lstm_embedding_forward.1} parent=1 // pred_check_branch
      %108 = sbr.rel (0) target = $region61
    $region60: #{lstm_embedding_forward.1} parent=1 // pred_region
      %109 = dma.done [#allocation6], 1536
    $region61: #{lstm_embedding_forward.1} parent=1 // pred_fallthru
      _
    // Predicated region
    $region62: #{lstm_embedding_forward.1} parent=1 // pred_check
      _
    $region63: #{lstm_embedding_forward.1} parent=1 // pred_check_branch
      %111 = sbr.rel (0) target = $region65
    $region64: #{lstm_embedding_forward.1} parent=1 // pred_region
      %112 = dma.done [#allocation9], 512
    $region65: #{lstm_embedding_forward.1} parent=1 // pred_fallthru
      _
    // Predicated region
    $region66: #{lstm_embedding_forward.1} parent=1 // pred_check
      _
    $region67: #{lstm_embedding_forward.1} parent=1 // pred_check_branch
      %114 = sbr.rel (0) target = $region69
    $region68: #{lstm_embedding_forward.1} parent=1 // pred_region
      %115 = dma.done [#allocation9], 16
    $region69: #{lstm_embedding_forward.1} parent=1 // pred_fallthru
      _
    // Predicated region
    $region70: #{lstm_embedding_forward.1} parent=1 // pred_check
      _
    $region71: #{lstm_embedding_forward.1} parent=1 // pred_check_branch
      %117 = sbr.rel (0) target = $region73
    $region72: #{lstm_embedding_forward.1} parent=1 // pred_region
      %118 = dma.done [#allocation12], 16
    $region73: #{lstm_embedding_forward.1} parent=1 // pred_fallthru
      _
    %v119 = vld [vmem:[#allocation5] sm:$0xff]
    %v120 = vld [vmem:[%s2] sm:$0x1]
    %v121 = vld [vmem:[#allocation3] sm:$0xf]
    %v123 = vlaneseq
    %v124 = vshrl.u32 %v123, 7
    %v125 = vsub.s32 0, %v124
    %v126 = vrot.slane %v120, %v125
    %vm128 = vcmask 64512
    %v130 = vsel %vm128, %v121, 0
    %132 = vmatprep.subr.mxu0 0.0
    %133 = vmatpush1.msra.mxu0 %v119
    %134 = vmatprep.subr.mxu0 0.0
    %135 = vmatpush1.msra.mxu0 0.0
    %136 = vmatprep.subr.mxu0 0.0
    %137 = vmatpush1.msra.mxu0 0.0
    %138 = vmatprep.subr.mxu0 0.0
    %139 = vmatpush1.msra.mxu0 0.0
    %140 = vmatprep.subr.mxu0 0.0
    %141 = vmatpush1.msra.mxu0 0.0
    %142 = vmatprep.subr.mxu0 0.0
    %143 = vmatpush1.msra.mxu0 0.0
    %144 = vmatprep.subr.mxu0 0.0
    %145 = vmatpush1.msra.mxu0 0.0
    %146 = vmatprep.subr.mxu0 0.0
    %147 = vmatpush1.msra.mxu0 0.0
    %148 = vmatprep.subr.mxu0 0.0
    %149 = vmatpush1.msra.mxu0 0.0
    %150 = vmatprep.subr.mxu0 0.0
    %151 = vmatpush1.msra.mxu0 0.0
    %152 = vmatprep.subr.mxu0 0.0
    %153 = vmatpush1.msra.mxu0 0.0
    %154 = vmatprep.subr.mxu0 0.0
    %155 = vmatpush1.msra.mxu0 0.0
    %156 = vmatprep.subr.mxu0 0.0
    %157 = vmatpush1.msra.mxu0 0.0
    %158 = vmatprep.subr.mxu0 0.0
    %159 = vmatpush1.msra.mxu0 0.0
    %160 = vmatprep.subr.mxu0 0.0
    %161 = vmatpush1.msra.mxu0 0.0
    %162 = vmatprep.subr.mxu0 0.0
    %163 = vmatpush1.msra.mxu0 0.0
    %164 = vmatprep.subr.mxu0 0.0
    %165 = vmatpush1.msra.mxu0 0.0
    %166 = vmatprep.subr.mxu0 0.0
    %167 = vmatpush1.msra.mxu0 0.0
    %168 = vmatprep.subr.mxu0 0.0
    %169 = vmatpush1.msra.mxu0 0.0
    %170 = vmatprep.subr.mxu0 0.0
    %171 = vmatpush1.msra.mxu0 0.0
    %172 = vmatprep.subr.mxu0 0.0
    %173 = vmatpush1.msra.mxu0 0.0
    %174 = vmatprep.subr.mxu0 0.0
    %175 = vmatpush1.msra.mxu0 0.0
    %176 = vmatprep.subr.mxu0 0.0
    %177 = vmatpush1.msra.mxu0 0.0
    %178 = vmatprep.subr.mxu0 0.0
    %179 = vmatpush1.msra.mxu0 0.0
    %180 = vmatprep.subr.mxu0 0.0
    %181 = vmatpush1.msra.mxu0 0.0
    %182 = vmatprep.subr.mxu0 0.0
    %183 = vmatpush1.msra.mxu0 0.0
    %184 = vmatprep.subr.mxu0 0.0
    %185 = vmatpush1.msra.mxu0 0.0
    %186 = vmatprep.subr.mxu0 0.0
    %187 = vmatpush1.msra.mxu0 0.0
    %188 = vmatprep.subr.mxu0 0.0
    %189 = vmatpush1.msra.mxu0 0.0
    %190 = vmatprep.subr.mxu0 0.0
    %191 = vmatpush1.msra.mxu0 0.0
    %192 = vmatprep.subr.mxu0 0.0
    %193 = vmatpush1.msra.mxu0 0.0
    %194 = vmatprep.subr.mxu0 0.0
    %195 = vmatpush1.msra.mxu0 0.0
    %196 = vmatprep.mubr.f32.mxu0 0.0
    %197 = vmatmul.mubr.f32.gmra.mrb[0].mxu0 %v130
    %v198 = vpop.f32.mrb[0].mxu0
    %v199 = vadd.f32 %v126, %v198
    %v200 = vpop.f32.mrb[0].mxu0
    %201 = vdwg.mxu0
    %s202 = scalar_lea.vmem [#allocation3], 4
    %v203 = vld [vmem:[%s202] sm:$0xf]
    %v205 = vsel %vm128, %v203, 0
    %207 = vmatprep.subr.mxu0 0.0
    %208 = vmatpush1.msra.mxu0 %v119
    %209 = vmatprep.subr.mxu0 0.0
    %210 = vmatpush1.msra.mxu0 0.0
    %211 = vmatprep.subr.mxu0 0.0
    %212 = vmatpush1.msra.mxu0 0.0
    %213 = vmatprep.subr.mxu0 0.0
    %214 = vmatpush1.msra.mxu0 0.0
    %215 = vmatprep.subr.mxu0 0.0
    %216 = vmatpush1.msra.mxu0 0.0
    %217 = vmatprep.subr.mxu0 0.0
    %218 = vmatpush1.msra.mxu0 0.0
    %219 = vmatprep.subr.mxu0 0.0
    %220 = vmatpush1.msra.mxu0 0.0
    %221 = vmatprep.subr.mxu0 0.0
    %222 = vmatpush1.msra.mxu0 0.0
    %223 = vmatprep.subr.mxu0 0.0
    %224 = vmatpush1.msra.mxu0 0.0
    %225 = vmatprep.subr.mxu0 0.0
    %226 = vmatpush1.msra.mxu0 0.0
    %227 = vmatprep.subr.mxu0 0.0
    %228 = vmatpush1.msra.mxu0 0.0
    %229 = vmatprep.subr.mxu0 0.0
    %230 = vmatpush1.msra.mxu0 0.0
    %231 = vmatprep.subr.mxu0 0.0
    %232 = vmatpush1.msra.mxu0 0.0
    %233 = vmatprep.subr.mxu0 0.0
    %234 = vmatpush1.msra.mxu0 0.0
    %235 = vmatprep.subr.mxu0 0.0
    %236 = vmatpush1.msra.mxu0 0.0
    %237 = vmatprep.subr.mxu0 0.0
    %238 = vmatpush1.msra.mxu0 0.0
    %239 = vmatprep.subr.mxu0 0.0
    %240 = vmatpush1.msra.mxu0 0.0
    %241 = vmatprep.subr.mxu0 0.0
    %242 = vmatpush1.msra.mxu0 0.0
    %243 = vmatprep.subr.mxu0 0.0
    %244 = vmatpush1.msra.mxu0 0.0
    %245 = vmatprep.subr.mxu0 0.0
    %246 = vmatpush1.msra.mxu0 0.0
    %247 = vmatprep.subr.mxu0 0.0
    %248 = vmatpush1.msra.mxu0 0.0
    %249 = vmatprep.subr.mxu0 0.0
    %250 = vmatpush1.msra.mxu0 0.0
    %251 = vmatprep.subr.mxu0 0.0
    %252 = vmatpush1.msra.mxu0 0.0
    %253 = vmatprep.subr.mxu0 0.0
    %254 = vmatpush1.msra.mxu0 0.0
    %255 = vmatprep.subr.mxu0 0.0
    %256 = vmatpush1.msra.mxu0 0.0
    %257 = vmatprep.subr.mxu0 0.0
    %258 = vmatpush1.msra.mxu0 0.0
    %259 = vmatprep.subr.mxu0 0.0
    %260 = vmatpush1.msra.mxu0 0.0
    %261 = vmatprep.subr.mxu0 0.0
    %262 = vmatpush1.msra.mxu0 0.0
    %263 = vmatprep.subr.mxu0 0.0
    %264 = vmatpush1.msra.mxu0 0.0
    %265 = vmatprep.subr.mxu0 0.0
    %266 = vmatpush1.msra.mxu0 0.0
    %267 = vmatprep.subr.mxu0 0.0
    %268 = vmatpush1.msra.mxu0 0.0
    %269 = vmatprep.subr.mxu0 0.0
    %270 = vmatpush1.msra.mxu0 0.0
    %271 = vmatprep.mubr.f32.mxu0 0.0
    %272 = vmatmul.mubr.f32.gmra.mrb[0].mxu0 %v205
    %v273 = vpop.f32.mrb[0].mxu0
    %v274 = vadd.f32 %v126, %v273
    %v275 = vpop.f32.mrb[0].mxu0
    %276 = vdwg.mxu0
    %s277 = scalar_lea.vmem [#allocation3], 8
    %v278 = vld [vmem:[%s277] sm:$0xf]
    %v280 = vsel %vm128, %v278, 0
    %282 = vmatprep.subr.mxu0 0.0
    %283 = vmatpush1.msra.mxu0 %v119
    %284 = vmatprep.subr.mxu0 0.0
    %285 = vmatpush1.msra.mxu0 0.0
    %286 = vmatprep.subr.mxu0 0.0
    %287 = vmatpush1.msra.mxu0 0.0
    %288 = vmatprep.subr.mxu0 0.0
    %289 = vmatpush1.msra.mxu0 0.0
    %290 = vmatprep.subr.mxu0 0.0
    %291 = vmatpush1.msra.mxu0 0.0
    %292 = vmatprep.subr.mxu0 0.0
    %293 = vmatpush1.msra.mxu0 0.0
    %294 = vmatprep.subr.mxu0 0.0
    %295 = vmatpush1.msra.mxu0 0.0
    %296 = vmatprep.subr.mxu0 0.0
    %297 = vmatpush1.msra.mxu0 0.0
    %298 = vmatprep.subr.mxu0 0.0
    %299 = vmatpush1.msra.mxu0 0.0
    %300 = vmatprep.subr.mxu0 0.0
    %301 = vmatpush1.msra.mxu0 0.0
    %302 = vmatprep.subr.mxu0 0.0
    %303 = vmatpush1.msra.mxu0 0.0
    %304 = vmatprep.subr.mxu0 0.0
    %305 = vmatpush1.msra.mxu0 0.0
    %306 = vmatprep.subr.mxu0 0.0
    %307 = vmatpush1.msra.mxu0 0.0
    %308 = vmatprep.subr.mxu0 0.0
    %309 = vmatpush1.msra.mxu0 0.0
    %310 = vmatprep.subr.mxu0 0.0
    %311 = vmatpush1.msra.mxu0 0.0
    %312 = vmatprep.subr.mxu0 0.0
    %313 = vmatpush1.msra.mxu0 0.0
    %314 = vmatprep.subr.mxu0 0.0
    %315 = vmatpush1.msra.mxu0 0.0
    %316 = vmatprep.subr.mxu0 0.0
    %317 = vmatpush1.msra.mxu0 0.0
    %318 = vmatprep.subr.mxu0 0.0
    %319 = vmatpush1.msra.mxu0 0.0
    %320 = vmatprep.subr.mxu0 0.0
    %321 = vmatpush1.msra.mxu0 0.0
    %322 = vmatprep.subr.mxu0 0.0
    %323 = vmatpush1.msra.mxu0 0.0
    %324 = vmatprep.subr.mxu0 0.0
    %325 = vmatpush1.msra.mxu0 0.0
    %326 = vmatprep.subr.mxu0 0.0
    %327 = vmatpush1.msra.mxu0 0.0
    %328 = vmatprep.subr.mxu0 0.0
    %329 = vmatpush1.msra.mxu0 0.0
    %330 = vmatprep.subr.mxu0 0.0
    %331 = vmatpush1.msra.mxu0 0.0
    %332 = vmatprep.subr.mxu0 0.0
    %333 = vmatpush1.msra.mxu0 0.0
    %334 = vmatprep.subr.mxu0 0.0
    %335 = vmatpush1.msra.mxu0 0.0
    %336 = vmatprep.subr.mxu0 0.0
    %337 = vmatpush1.msra.mxu0 0.0
    %338 = vmatprep.subr.mxu0 0.0
    %339 = vmatpush1.msra.mxu0 0.0
    %340 = vmatprep.subr.mxu0 0.0
    %341 = vmatpush1.msra.mxu0 0.0
    %342 = vmatprep.subr.mxu0 0.0
    %343 = vmatpush1.msra.mxu0 0.0
    %344 = vmatprep.subr.mxu0 0.0
    %345 = vmatpush1.msra.mxu0 0.0
    %346 = vmatprep.mubr.f32.mxu0 0.0
    %347 = vmatmul.mubr.f32.gmra.mrb[0].mxu0 %v280
    %v348 = vpop.f32.mrb[0].mxu0
    %v349 = vadd.f32 %v126, %v348
    %v350 = vpop.f32.mrb[0].mxu0
    %351 = vdwg.mxu0
    %s352 = scalar_lea.vmem [#allocation3], 12
    %v353 = vld [vmem:[%s352] sm:$0xf]
    %v355 = vsel %vm128, %v353, 0
    %357 = vmatprep.subr.mxu0 0.0
    %358 = vmatpush1.msra.mxu0 %v119
    %359 = vmatprep.subr.mxu0 0.0
    %360 = vmatpush1.msra.mxu0 0.0
    %361 = vmatprep.subr.mxu0 0.0
    %362 = vmatpush1.msra.mxu0 0.0
    %363 = vmatprep.subr.mxu0 0.0
    %364 = vmatpush1.msra.mxu0 0.0
    %365 = vmatprep.subr.mxu0 0.0
    %366 = vmatpush1.msra.mxu0 0.0
    %367 = vmatprep.subr.mxu0 0.0
    %368 = vmatpush1.msra.mxu0 0.0
    %369 = vmatprep.subr.mxu0 0.0
    %370 = vmatpush1.msra.mxu0 0.0
    %371 = vmatprep.subr.mxu0 0.0
    %372 = vmatpush1.msra.mxu0 0.0
    %373 = vmatprep.subr.mxu0 0.0
    %374 = vmatpush1.msra.mxu0 0.0
    %375 = vmatprep.subr.mxu0 0.0
    %376 = vmatpush1.msra.mxu0 0.0
    %377 = vmatprep.subr.mxu0 0.0
    %378 = vmatpush1.msra.mxu0 0.0
    %379 = vmatprep.subr.mxu0 0.0
    %380 = vmatpush1.msra.mxu0 0.0
    %381 = vmatprep.subr.mxu0 0.0
    %382 = vmatpush1.msra.mxu0 0.0
    %383 = vmatprep.subr.mxu0 0.0
    %384 = vmatpush1.msra.mxu0 0.0
    %385 = vmatprep.subr.mxu0 0.0
    %386 = vmatpush1.msra.mxu0 0.0
    %387 = vmatprep.subr.mxu0 0.0
    %388 = vmatpush1.msra.mxu0 0.0
    %389 = vmatprep.subr.mxu0 0.0
    %390 = vmatpush1.msra.mxu0 0.0
    %391 = vmatprep.subr.mxu0 0.0
    %392 = vmatpush1.msra.mxu0 0.0
    %393 = vmatprep.subr.mxu0 0.0
    %394 = vmatpush1.msra.mxu0 0.0
    %395 = vmatprep.subr.mxu0 0.0
    %396 = vmatpush1.msra.mxu0 0.0
    %397 = vmatprep.subr.mxu0 0.0
    %398 = vmatpush1.msra.mxu0 0.0
    %399 = vmatprep.subr.mxu0 0.0
    %400 = vmatpush1.msra.mxu0 0.0
    %401 = vmatprep.subr.mxu0 0.0
    %402 = vmatpush1.msra.mxu0 0.0
    %403 = vmatprep.subr.mxu0 0.0
    %404 = vmatpush1.msra.mxu0 0.0
    %405 = vmatprep.subr.mxu0 0.0
    %406 = vmatpush1.msra.mxu0 0.0
    %407 = vmatprep.subr.mxu0 0.0
    %408 = vmatpush1.msra.mxu0 0.0
    %409 = vmatprep.subr.mxu0 0.0
    %410 = vmatpush1.msra.mxu0 0.0
    %411 = vmatprep.subr.mxu0 0.0
    %412 = vmatpush1.msra.mxu0 0.0
    %413 = vmatprep.subr.mxu0 0.0
    %414 = vmatpush1.msra.mxu0 0.0
    %415 = vmatprep.subr.mxu0 0.0
    %416 = vmatpush1.msra.mxu0 0.0
    %417 = vmatprep.subr.mxu0 0.0
    %418 = vmatpush1.msra.mxu0 0.0
    %419 = vmatprep.subr.mxu0 0.0
    %420 = vmatpush1.msra.mxu0 0.0
    %421 = vmatprep.mubr.f32.mxu0 0.0
    %422 = vmatmul.mubr.f32.gmra.mrb[0].mxu0 %v355
    %v423 = vpop.f32.mrb[0].mxu0
    %v424 = vadd.f32 %v126, %v423
    %v425 = vpop.f32.mrb[0].mxu0
    %426 = vdwg.mxu0
    %s427 = scalar_lea.vmem [#allocation3], 16
    %v428 = vld [vmem:[%s427] sm:$0xf]
    %v430 = vsel %vm128, %v428, 0
    %432 = vmatprep.subr.mxu0 0.0
    %433 = vmatpush1.msra.mxu0 %v119
    %434 = vmatprep.subr.mxu0 0.0
    %435 = vmatpush1.msra.mxu0 0.0
    %436 = vmatprep.subr.mxu0 0.0
    %437 = vmatpush1.msra.mxu0 0.0
    %438 = vmatprep.subr.mxu0 0.0
    %439 = vmatpush1.msra.mxu0 0.0
    %440 = vmatprep.subr.mxu0 0.0
    %441 = vmatpush1.msra.mxu0 0.0
    %442 = vmatprep.subr.mxu0 0.0
    %443 = vmatpush1.msra.mxu0 0.0
    %444 = vmatprep.subr.mxu0 0.0
    %445 = vmatpush1.msra.mxu0 0.0
    %446 = vmatprep.subr.mxu0 0.0
    %447 = vmatpush1.msra.mxu0 0.0
    %448 = vmatprep.subr.mxu0 0.0
    %449 = vmatpush1.msra.mxu0 0.0
    %450 = vmatprep.subr.mxu0 0.0
    %451 = vmatpush1.msra.mxu0 0.0
    %452 = vmatprep.subr.mxu0 0.0
    %453 = vmatpush1.msra.mxu0 0.0
    %454 = vmatprep.subr.mxu0 0.0
    %455 = vmatpush1.msra.mxu0 0.0
    %456 = vmatprep.subr.mxu0 0.0
    %457 = vmatpush1.msra.mxu0 0.0
    %458 = vmatprep.subr.mxu0 0.0
    %459 = vmatpush1.msra.mxu0 0.0
    %460 = vmatprep.subr.mxu0 0.0
    %461 = vmatpush1.msra.mxu0 0.0
    %462 = vmatprep.subr.mxu0 0.0
    %463 = vmatpush1.msra.mxu0 0.0
    %464 = vmatprep.subr.mxu0 0.0
    %465 = vmatpush1.msra.mxu0 0.0
    %466 = vmatprep.subr.mxu0 0.0
    %467 = vmatpush1.msra.mxu0 0.0
    %468 = vmatprep.subr.mxu0 0.0
    %469 = vmatpush1.msra.mxu0 0.0
    %470 = vmatprep.subr.mxu0 0.0
    %471 = vmatpush1.msra.mxu0 0.0
    %472 = vmatprep.subr.mxu0 0.0
    %473 = vmatpush1.msra.mxu0 0.0
    %474 = vmatprep.subr.mxu0 0.0
    %475 = vmatpush1.msra.mxu0 0.0
    %476 = vmatprep.subr.mxu0 0.0
    %477 = vmatpush1.msra.mxu0 0.0
    %478 = vmatprep.subr.mxu0 0.0
    %479 = vmatpush1.msra.mxu0 0.0
    %480 = vmatprep.subr.mxu0 0.0
    %481 = vmatpush1.msra.mxu0 0.0
    %482 = vmatprep.subr.mxu0 0.0
    %483 = vmatpush1.msra.mxu0 0.0
    %484 = vmatprep.subr.mxu0 0.0
    %485 = vmatpush1.msra.mxu0 0.0
    %486 = vmatprep.subr.mxu0 0.0
    %487 = vmatpush1.msra.mxu0 0.0
    %488 = vmatprep.subr.mxu0 0.0
    %489 = vmatpush1.msra.mxu0 0.0
    %490 = vmatprep.subr.mxu0 0.0
    %491 = vmatpush1.msra.mxu0 0.0
    %492 = vmatprep.subr.mxu0 0.0
    %493 = vmatpush1.msra.mxu0 0.0
    %494 = vmatprep.subr.mxu0 0.0
    %495 = vmatpush1.msra.mxu0 0.0
    %496 = vmatprep.mubr.f32.mxu0 0.0
    %497 = vmatmul.mubr.f32.gmra.mrb[0].mxu0 %v430
    %v498 = vpop.f32.mrb[0].mxu0
    %v499 = vadd.f32 %v126, %v498
    %v500 = vpop.f32.mrb[0].mxu0
    %501 = vdwg.mxu0
    %s502 = scalar_lea.vmem [#allocation3], 20
    %v503 = vld [vmem:[%s502] sm:$0xf]
    %v505 = vsel %vm128, %v503, 0
    %507 = vmatprep.subr.mxu0 0.0
    %508 = vmatpush1.msra.mxu0 %v119
    %509 = vmatprep.subr.mxu0 0.0
    %510 = vmatpush1.msra.mxu0 0.0
    %511 = vmatprep.subr.mxu0 0.0
    %512 = vmatpush1.msra.mxu0 0.0
    %513 = vmatprep.subr.mxu0 0.0
    %514 = vmatpush1.msra.mxu0 0.0
    %515 = vmatprep.subr.mxu0 0.0
    %516 = vmatpush1.msra.mxu0 0.0
    %517 = vmatprep.subr.mxu0 0.0
    %518 = vmatpush1.msra.mxu0 0.0
    %519 = vmatprep.subr.mxu0 0.0
    %520 = vmatpush1.msra.mxu0 0.0
    %521 = vmatprep.subr.mxu0 0.0
    %522 = vmatpush1.msra.mxu0 0.0
    %523 = vmatprep.subr.mxu0 0.0
    %524 = vmatpush1.msra.mxu0 0.0
    %525 = vmatprep.subr.mxu0 0.0
    %526 = vmatpush1.msra.mxu0 0.0
    %527 = vmatprep.subr.mxu0 0.0
    %528 = vmatpush1.msra.mxu0 0.0
    %529 = vmatprep.subr.mxu0 0.0
    %530 = vmatpush1.msra.mxu0 0.0
    %531 = vmatprep.subr.mxu0 0.0
    %532 = vmatpush1.msra.mxu0 0.0
    %533 = vmatprep.subr.mxu0 0.0
    %534 = vmatpush1.msra.mxu0 0.0
    %535 = vmatprep.subr.mxu0 0.0
    %536 = vmatpush1.msra.mxu0 0.0
    %537 = vmatprep.subr.mxu0 0.0
    %538 = vmatpush1.msra.mxu0 0.0
    %539 = vmatprep.subr.mxu0 0.0
    %540 = vmatpush1.msra.mxu0 0.0
    %541 = vmatprep.subr.mxu0 0.0
    %542 = vmatpush1.msra.mxu0 0.0
    %543 = vmatprep.subr.mxu0 0.0
    %544 = vmatpush1.msra.mxu0 0.0
    %545 = vmatprep.subr.mxu0 0.0
    %546 = vmatpush1.msra.mxu0 0.0
    %547 = vmatprep.subr.mxu0 0.0
    %548 = vmatpush1.msra.mxu0 0.0
    %549 = vmatprep.subr.mxu0 0.0
    %550 = vmatpush1.msra.mxu0 0.0
    %551 = vmatprep.subr.mxu0 0.0
    %552 = vmatpush1.msra.mxu0 0.0
    %553 = vmatprep.subr.mxu0 0.0
    %554 = vmatpush1.msra.mxu0 0.0
    %555 = vmatprep.subr.mxu0 0.0
    %556 = vmatpush1.msra.mxu0 0.0
    %557 = vmatprep.subr.mxu0 0.0
    %558 = vmatpush1.msra.mxu0 0.0
    %559 = vmatprep.subr.mxu0 0.0
    %560 = vmatpush1.msra.mxu0 0.0
    %561 = vmatprep.subr.mxu0 0.0
    %562 = vmatpush1.msra.mxu0 0.0
    %563 = vmatprep.subr.mxu0 0.0
    %564 = vmatpush1.msra.mxu0 0.0
    %565 = vmatprep.subr.mxu0 0.0
    %566 = vmatpush1.msra.mxu0 0.0
    %567 = vmatprep.subr.mxu0 0.0
    %568 = vmatpush1.msra.mxu0 0.0
    %569 = vmatprep.subr.mxu0 0.0
    %570 = vmatpush1.msra.mxu0 0.0
    %571 = vmatprep.mubr.f32.mxu0 0.0
    %572 = vmatmul.mubr.f32.gmra.mrb[0].mxu0 %v505
    %v573 = vpop.f32.mrb[0].mxu0
    %v574 = vadd.f32 %v126, %v573
    %v575 = vpop.f32.mrb[0].mxu0
    %576 = vdwg.mxu0
    %578 = vrot.lane.b32.xlu0 %v274, 16
    %v579 = vpop.permute.xlu0 %578
    %582 = vrot.lane.b32.xlu0 %v349, 32
    %v583 = vpop.permute.xlu0 %582
    %586 = vrot.lane.b32.xlu0 %v424, 48
    %v587 = vpop.permute.xlu0 %586
    %590 = vrot.lane.b32.xlu0 %v499, 64
    %v591 = vpop.permute.xlu0 %590
    %594 = vrot.lane.b32.xlu0 %v574, 80
    %v595 = vpop.permute.xlu0 %594
    %vm597 = vcmask 130048
    %v598 = vsel %vm597, %v199, %v579
    %vm599 = vcmask 261120
    %v600 = vsel %vm599, %v598, %v583
    %vm601 = vcmask 392192
    %v602 = vsel %vm601, %v600, %v587
    %vm603 = vcmask 523264
    %v604 = vsel %vm603, %v602, %v591
    %vm605 = vcmask 654336
    %v606 = vsel %vm605, %v604, %v595
    %v607 = vld [vmem:[#allocation7] sm:$0xff]
    %v608 = vld [vmem:[#allocation7 + $0x8] sm:$0xff]
    %v609 = vld [vmem:[#allocation7 + $0x10] sm:$0xff]
    %v610 = vld [vmem:[#allocation7 + $0x18] sm:$0xff]
    %v611 = vld [vmem:[#allocation7 + $0x20] sm:$0xff]
    %v612 = vld [vmem:[#allocation7 + $0x28] sm:$0xff]
    %v613 = vld [vmem:[#allocation7 + $0x30] sm:$0xff]
    %v614 = vld [vmem:[#allocation7 + $0x38] sm:$0xff]
    %v615 = vld [vmem:[#allocation7 + $0x40] sm:$0xff]
    %v616 = vld [vmem:[#allocation7 + $0x48] sm:$0xff]
    %v617 = vld [vmem:[#allocation7 + $0x50] sm:$0xff]
    %v618 = vld [vmem:[#allocation7 + $0x58] sm:$0xff]
    %v619 = vld [vmem:[#allocation10] sm:$0x1]
    %v621 = vlaneseq
    %v622 = vshrl.u32 %v621, 7
    %v623 = vsub.s32 0, %v622
    %v624 = vrot.slane %v619, %v623
    %vm626 = vcmask 785408
    %v628 = vsel %vm626, %v606, 0
    %630 = vmatprep.subr.mxu0 0.0
    %631 = vmatpush1.msra.mxu0 %v607
    %632 = vmatprep.subr.mxu0 0.0
    %633 = vmatpush1.msra.mxu0 %v608
    %634 = vmatprep.subr.mxu0 0.0
    %635 = vmatpush1.msra.mxu0 %v609
    %636 = vmatprep.subr.mxu0 0.0
    %637 = vmatpush1.msra.mxu0 %v610
    %638 = vmatprep.subr.mxu0 0.0
    %639 = vmatpush1.msra.mxu0 %v611
    %640 = vmatprep.subr.mxu0 0.0
    %641 = vmatpush1.msra.mxu0 %v612
    %642 = vmatprep.subr.mxu0 0.0
    %643 = vmatpush1.msra.mxu0 %v613
    %644 = vmatprep.subr.mxu0 0.0
    %645 = vmatpush1.msra.mxu0 %v614
    %646 = vmatprep.subr.mxu0 0.0
    %647 = vmatpush1.msra.mxu0 %v615
    %648 = vmatprep.subr.mxu0 0.0
    %649 = vmatpush1.msra.mxu0 %v616
    %650 = vmatprep.subr.mxu0 0.0
    %651 = vmatpush1.msra.mxu0 %v617
    %652 = vmatprep.subr.mxu0 0.0
    %653 = vmatpush1.msra.mxu0 %v618
    %654 = vmatprep.subr.mxu0 0.0
    %655 = vmatpush1.msra.mxu0 0.0
    %656 = vmatprep.subr.mxu0 0.0
    %657 = vmatpush1.msra.mxu0 0.0
    %658 = vmatprep.subr.mxu0 0.0
    %659 = vmatpush1.msra.mxu0 0.0
    %660 = vmatprep.subr.mxu0 0.0
    %661 = vmatpush1.msra.mxu0 0.0
    %662 = vmatprep.subr.mxu0 0.0
    %663 = vmatpush1.msra.mxu0 0.0
    %664 = vmatprep.subr.mxu0 0.0
    %665 = vmatpush1.msra.mxu0 0.0
    %666 = vmatprep.subr.mxu0 0.0
    %667 = vmatpush1.msra.mxu0 0.0
    %668 = vmatprep.subr.mxu0 0.0
    %669 = vmatpush1.msra.mxu0 0.0
    %670 = vmatprep.subr.mxu0 0.0
    %671 = vmatpush1.msra.mxu0 0.0
    %672 = vmatprep.subr.mxu0 0.0
    %673 = vmatpush1.msra.mxu0 0.0
    %674 = vmatprep.subr.mxu0 0.0
    %675 = vmatpush1.msra.mxu0 0.0
    %676 = vmatprep.subr.mxu0 0.0
    %677 = vmatpush1.msra.mxu0 0.0
    %678 = vmatprep.subr.mxu0 0.0
    %679 = vmatpush1.msra.mxu0 0.0
    %680 = vmatprep.subr.mxu0 0.0
    %681 = vmatpush1.msra.mxu0 0.0
    %682 = vmatprep.subr.mxu0 0.0
    %683 = vmatpush1.msra.mxu0 0.0
    %684 = vmatprep.subr.mxu0 0.0
    %685 = vmatpush1.msra.mxu0 0.0
    %686 = vmatprep.subr.mxu0 0.0
    %687 = vmatpush1.msra.mxu0 0.0
    %688 = vmatprep.subr.mxu0 0.0
    %689 = vmatpush1.msra.mxu0 0.0
    %690 = vmatprep.subr.mxu0 0.0
    %691 = vmatpush1.msra.mxu0 0.0
    %692 = vmatprep.subr.mxu0 0.0
    %693 = vmatpush1.msra.mxu0 0.0
    %694 = vmatprep.mubr.f32.mxu0 0.0
    %695 = vmatmul.mubr.f32.gmra.mrb[0].mxu0 %v628
    %v696 = vpop.f32.mrb[0].mxu0
    %v697 = vadd.f32 %v624, %v696
    %v698 = vpop.f32.mrb[0].mxu0
    %699 = vdwg.mxu0
    %v700 = vld [vmem:[#allocation8] sm:$0xff]
    %v701 = vld [vmem:[#allocation8 + $0x8] sm:$0xff]
    %v702 = vld [vmem:[#allocation8 + $0x10] sm:$0xff]
    %v703 = vld [vmem:[#allocation8 + $0x18] sm:$0xff]
    %v704 = vld [vmem:[%s6] sm:$0xff]
    %v705 = vld [vmem:[%s6 + $0x8] sm:$0xff]
    %v706 = vld [vmem:[%s6 + $0x10] sm:$0xff]
    %v707 = vld [vmem:[%s6 + $0x18] sm:$0xff]
    %v708 = vld [vmem:[%s6 + $0x20] sm:$0xff]
    %v709 = vld [vmem:[%s6 + $0x28] sm:$0xff]
    %v710 = vld [vmem:[%s6 + $0x30] sm:$0xff]
    %v711 = vld [vmem:[%s6 + $0x38] sm:$0xff]
    %v712 = vld [vmem:[#allocation11] sm:$0x1]
    %v713 = vld [vmem:[%s10] sm:$0x1]
    %s714 = scalar_lea.vmem %s10, 1
    %v715 = vld [vmem:[%s714] sm:$0x1]
    %v716 = vld [vmem:[%s11] sm:$0x1]
    %s717 = scalar_lea.vmem %s11, 1
    %v718 = vld [vmem:[%s717] sm:$0x1]
    %v720 = vsel %vm599, %v713, 0
    %722 = vmatprep.subr.mxu0 0.0
    %723 = vmatpush1.msra.mxu0 %v700
    %724 = vmatprep.subr.mxu0 0.0
    %725 = vmatpush1.msra.mxu0 %v701
    %726 = vmatprep.subr.mxu0 0.0
    %727 = vmatpush1.msra.mxu0 %v702
    %728 = vmatprep.subr.mxu0 0.0
    %729 = vmatpush1.msra.mxu0 %v703
    %730 = vmatprep.subr.mxu0 0.0
    %731 = vmatpush1.msra.mxu0 0.0
    %732 = vmatprep.subr.mxu0 0.0
    %733 = vmatpush1.msra.mxu0 0.0
    %734 = vmatprep.subr.mxu0 0.0
    %735 = vmatpush1.msra.mxu0 0.0
    %736 = vmatprep.subr.mxu0 0.0
    %737 = vmatpush1.msra.mxu0 0.0
    %738 = vmatprep.subr.mxu0 0.0
    %739 = vmatpush1.msra.mxu0 0.0
    %740 = vmatprep.subr.mxu0 0.0
    %741 = vmatpush1.msra.mxu0 0.0
    %742 = vmatprep.subr.mxu0 0.0
    %743 = vmatpush1.msra.mxu0 0.0
    %744 = vmatprep.subr.mxu0 0.0
    %745 = vmatpush1.msra.mxu0 0.0
    %746 = vmatprep.subr.mxu0 0.0
    %747 = vmatpush1.msra.mxu0 0.0
    %748 = vmatprep.subr.mxu0 0.0
    %749 = vmatpush1.msra.mxu0 0.0
    %750 = vmatprep.subr.mxu0 0.0
    %751 = vmatpush1.msra.mxu0 0.0
    %752 = vmatprep.subr.mxu0 0.0
    %753 = vmatpush1.msra.mxu0 0.0
    %754 = vmatprep.subr.mxu0 0.0
    %755 = vmatpush1.msra.mxu0 0.0
    %756 = vmatprep.subr.mxu0 0.0
    %757 = vmatpush1.msra.mxu0 0.0
    %758 = vmatprep.subr.mxu0 0.0
    %759 = vmatpush1.msra.mxu0 0.0
    %760 = vmatprep.subr.mxu0 0.0
    %761 = vmatpush1.msra.mxu0 0.0
    %762 = vmatprep.subr.mxu0 0.0
    %763 = vmatpush1.msra.mxu0 0.0
    %764 = vmatprep.subr.mxu0 0.0
    %765 = vmatpush1.msra.mxu0 0.0
    %766 = vmatprep.subr.mxu0 0.0
    %767 = vmatpush1.msra.mxu0 0.0
    %768 = vmatprep.subr.mxu0 0.0
    %769 = vmatpush1.msra.mxu0 0.0
    %770 = vmatprep.subr.mxu0 0.0
    %771 = vmatpush1.msra.mxu0 0.0
    %772 = vmatprep.subr.mxu0 0.0
    %773 = vmatpush1.msra.mxu0 0.0
    %774 = vmatprep.subr.mxu0 0.0
    %775 = vmatpush1.msra.mxu0 0.0
    %776 = vmatprep.subr.mxu0 0.0
    %777 = vmatpush1.msra.mxu0 0.0
    %778 = vmatprep.subr.mxu0 0.0
    %779 = vmatpush1.msra.mxu0 0.0
    %780 = vmatprep.subr.mxu0 0.0
    %781 = vmatpush1.msra.mxu0 0.0
    %782 = vmatprep.subr.mxu0 0.0
    %783 = vmatpush1.msra.mxu0 0.0
    %784 = vmatprep.subr.mxu0 0.0
    %785 = vmatpush1.msra.mxu0 0.0
    %786 = vmatprep.mubr.f32.mxu0 0.0
    %787 = vmatmul.mubr.f32.gmra.mrb[0].mxu0 %v720
    %v788 = vpop.f32.mrb[0].mxu0
    %v789 = vadd.f32 0.0, %v788
    %v790 = vpop.f32.mrb[0].mxu0
    %791 = vdwg.mxu0
    %v792 = vadd.f32 %v697, %v789
    %v793 = vxor.u32 %v792, 2147483648
    %v794 = vmul.f32 %v793, 1.442695
    %v795 = vpow.pop %v794
    %v796 = vadd.f32 %v795, 1.0
    %v797 = vrcp.pop %v796
    %v798 = vmul.f32 1.0, %v797
    %v799 = vtanh.pop %v792
    %v801 = vlaneseq
    %v802 = vshrl.u32 %v801, 7
    %v803 = vsub.s32 0, %v802
    %v804 = vrot.slane %v716, %v803
    %805 = vrot.lane.b32.xlu0 %v804, 32
    %v806 = vpop.permute.xlu0 %805
    %v808 = vmul.f32 %v798, %v806
    %810 = vrot.lane.b32.xlu0 %v799, 64
    %v811 = vpop.permute.xlu0 %810
    %v813 = vmul.f32 %v798, %v811
    %815 = vrot.lane.b32.xlu0 %v813, 32
    %v816 = vpop.permute.xlu0 %815
    %v818 = vadd.f32 %v808, %v816
    %v819 = vtanh.pop %v818
    %821 = vrot.lane.b32.xlu0 %v819, 64
    %v822 = vpop.permute.xlu0 %821
    %v824 = vmul.f32 %v798, %v822
    %826 = vrot.lane.b32.xlu0 %v824, 32
    %v827 = vpop.permute.xlu0 %826
    %v830 = vlaneseq
    %v831 = vshrl.u32 %v830, 7
    %v832 = vsub.s32 0, %v831
    %v833 = vrot.slane %v715, %v832
    %834 = vrot.lane.b32.xlu0 %v833, 32
    %v835 = vpop.permute.xlu0 %834
    %v837 = vsel %vm599, %v827, %v835
    %v839 = vsel %vm603, %v837, 0
    %841 = vmatprep.subr.mxu0 0.0
    %842 = vmatpush1.msra.mxu0 %v704
    %843 = vmatprep.subr.mxu0 0.0
    %844 = vmatpush1.msra.mxu0 %v705
    %845 = vmatprep.subr.mxu0 0.0
    %846 = vmatpush1.msra.mxu0 %v706
    %847 = vmatprep.subr.mxu0 0.0
    %848 = vmatpush1.msra.mxu0 %v707
    %849 = vmatprep.subr.mxu0 0.0
    %850 = vmatpush1.msra.mxu0 %v708
    %851 = vmatprep.subr.mxu0 0.0
    %852 = vmatpush1.msra.mxu0 %v709
    %853 = vmatprep.subr.mxu0 0.0
    %854 = vmatpush1.msra.mxu0 %v710
    %855 = vmatprep.subr.mxu0 0.0
    %856 = vmatpush1.msra.mxu0 %v711
    %857 = vmatprep.subr.mxu0 0.0
    %858 = vmatpush1.msra.mxu0 0.0
    %859 = vmatprep.subr.mxu0 0.0
    %860 = vmatpush1.msra.mxu0 0.0
    %861 = vmatprep.subr.mxu0 0.0
    %862 = vmatpush1.msra.mxu0 0.0
    %863 = vmatprep.subr.mxu0 0.0
    %864 = vmatpush1.msra.mxu0 0.0
    %865 = vmatprep.subr.mxu0 0.0
    %866 = vmatpush1.msra.mxu0 0.0
    %867 = vmatprep.subr.mxu0 0.0
    %868 = vmatpush1.msra.mxu0 0.0
    %869 = vmatprep.subr.mxu0 0.0
    %870 = vmatpush1.msra.mxu0 0.0
    %871 = vmatprep.subr.mxu0 0.0
    %872 = vmatpush1.msra.mxu0 0.0
    %873 = vmatprep.subr.mxu0 0.0
    %874 = vmatpush1.msra.mxu0 0.0
    %875 = vmatprep.subr.mxu0 0.0
    %876 = vmatpush1.msra.mxu0 0.0
    %877 = vmatprep.subr.mxu0 0.0
    %878 = vmatpush1.msra.mxu0 0.0
    %879 = vmatprep.subr.mxu0 0.0
    %880 = vmatpush1.msra.mxu0 0.0
    %881 = vmatprep.subr.mxu0 0.0
    %882 = vmatpush1.msra.mxu0 0.0
    %883 = vmatprep.subr.mxu0 0.0
    %884 = vmatpush1.msra.mxu0 0.0
    %885 = vmatprep.subr.mxu0 0.0
    %886 = vmatpush1.msra.mxu0 0.0
    %887 = vmatprep.subr.mxu0 0.0
    %888 = vmatpush1.msra.mxu0 0.0
    %889 = vmatprep.subr.mxu0 0.0
    %890 = vmatpush1.msra.mxu0 0.0
    %891 = vmatprep.subr.mxu0 0.0
    %892 = vmatpush1.msra.mxu0 0.0
    %893 = vmatprep.subr.mxu0 0.0
    %894 = vmatpush1.msra.mxu0 0.0
    %895 = vmatprep.subr.mxu0 0.0
    %896 = vmatpush1.msra.mxu0 0.0
    %897 = vmatprep.subr.mxu0 0.0
    %898 = vmatpush1.msra.mxu0 0.0
    %899 = vmatprep.subr.mxu0 0.0
    %900 = vmatpush1.msra.mxu0 0.0
    %901 = vmatprep.subr.mxu0 0.0
    %902 = vmatpush1.msra.mxu0 0.0
    %903 = vmatprep.subr.mxu0 0.0
    %904 = vmatpush1.msra.mxu0 0.0
    %905 = vmatprep.mubr.f32.mxu0 0.0
    %906 = vmatmul.mubr.f32.gmra.mrb[0].mxu0 %v839
    %v907 = vpop.f32.mrb[0].mxu0
    %v908 = vadd.f32 %v712, %v907
    %v909 = vpop.f32.mrb[0].mxu0
    %910 = vdwg.mxu0
    %v911 = vxor.u32 %v908, 2147483648
    %v912 = vmul.f32 %v911, 1.442695
    %v913 = vpow.pop %v912
    %v914 = vadd.f32 %v913, 1.0
    %v915 = vrcp.pop %v914
    %v916 = vmul.f32 1.0, %v915
    %v917 = vtanh.pop %v908
    %v919 = vlaneseq
    %v920 = vshrl.u32 %v919, 7
    %v921 = vsub.s32 0, %v920
    %v922 = vrot.slane %v718, %v921
    %923 = vrot.lane.b32.xlu0 %v922, 32
    %v924 = vpop.permute.xlu0 %923
    %v926 = vmul.f32 %v916, %v924
    %928 = vrot.lane.b32.xlu0 %v917, 64
    %v929 = vpop.permute.xlu0 %928
    %v931 = vmul.f32 %v916, %v929
    %933 = vrot.lane.b32.xlu0 %v931, 32
    %v934 = vpop.permute.xlu0 %933
    %v936 = vadd.f32 %v926, %v934
    %v937 = vtanh.pop %v936
    %939 = vrot.lane.b32.xlu0 %v937, 64
    %v940 = vpop.permute.xlu0 %939
    %v942 = vmul.f32 %v916, %v940
    %v943 = vsel %vm599, %v827, 0
    %945 = vmatprep.subr.mxu0 0.0
    %946 = vmatpush1.msra.mxu0 %v700
    %947 = vmatprep.subr.mxu0 0.0
    %948 = vmatpush1.msra.mxu0 %v701
    %949 = vmatprep.subr.mxu0 0.0
    %950 = vmatpush1.msra.mxu0 %v702
    %951 = vmatprep.subr.mxu0 0.0
    %952 = vmatpush1.msra.mxu0 %v703
    %953 = vmatprep.subr.mxu0 0.0
    %954 = vmatpush1.msra.mxu0 0.0
    %955 = vmatprep.subr.mxu0 0.0
    %956 = vmatpush1.msra.mxu0 0.0
    %957 = vmatprep.subr.mxu0 0.0
    %958 = vmatpush1.msra.mxu0 0.0
    %959 = vmatprep.subr.mxu0 0.0
    %960 = vmatpush1.msra.mxu0 0.0
    %961 = vmatprep.subr.mxu0 0.0
    %962 = vmatpush1.msra.mxu0 0.0
    %963 = vmatprep.subr.mxu0 0.0
    %964 = vmatpush1.msra.mxu0 0.0
    %965 = vmatprep.subr.mxu0 0.0
    %966 = vmatpush1.msra.mxu0 0.0
    %967 = vmatprep.subr.mxu0 0.0
    %968 = vmatpush1.msra.mxu0 0.0
    %969 = vmatprep.subr.mxu0 0.0
    %970 = vmatpush1.msra.mxu0 0.0
    %971 = vmatprep.subr.mxu0 0.0
    %972 = vmatpush1.msra.mxu0 0.0
    %973 = vmatprep.subr.mxu0 0.0
    %974 = vmatpush1.msra.mxu0 0.0
    %975 = vmatprep.subr.mxu0 0.0
    %976 = vmatpush1.msra.mxu0 0.0
    %977 = vmatprep.subr.mxu0 0.0
    %978 = vmatpush1.msra.mxu0 0.0
    %979 = vmatprep.subr.mxu0 0.0
    %980 = vmatpush1.msra.mxu0 0.0
    %981 = vmatprep.subr.mxu0 0.0
    %982 = vmatpush1.msra.mxu0 0.0
    %983 = vmatprep.subr.mxu0 0.0
    %984 = vmatpush1.msra.mxu0 0.0
    %985 = vmatprep.subr.mxu0 0.0
    %986 = vmatpush1.msra.mxu0 0.0
    %987 = vmatprep.subr.mxu0 0.0
    %988 = vmatpush1.msra.mxu0 0.0
    %989 = vmatprep.subr.mxu0 0.0
    %990 = vmatpush1.msra.mxu0 0.0
    %991 = vmatprep.subr.mxu0 0.0
    %992 = vmatpush1.msra.mxu0 0.0
    %993 = vmatprep.subr.mxu0 0.0
    %994 = vmatpush1.msra.mxu0 0.0
    %995 = vmatprep.subr.mxu0 0.0
    %996 = vmatpush1.msra.mxu0 0.0
    %997 = vmatprep.subr.mxu0 0.0
    %998 = vmatpush1.msra.mxu0 0.0
    %999 = vmatprep.subr.mxu0 0.0
    %1000 = vmatpush1.msra.mxu0 0.0
    %1001 = vmatprep.subr.mxu0 0.0
    %1002 = vmatpush1.msra.mxu0 0.0
    %1003 = vmatprep.subr.mxu0 0.0
    %1004 = vmatpush1.msra.mxu0 0.0
    %1005 = vmatprep.subr.mxu0 0.0
    %1006 = vmatpush1.msra.mxu0 0.0
    %1007 = vmatprep.subr.mxu0 0.0
    %1008 = vmatpush1.msra.mxu0 0.0
    %1009 = vmatprep.mubr.f32.mxu0 0.0
    %1010 = vmatmul.mubr.f32.gmra.mrb[0].mxu0 %v943
    %v1011 = vpop.f32.mrb[0].mxu0
    %v1012 = vadd.f32 0.0, %v1011
    %v1013 = vpop.f32.mrb[0].mxu0
    %1014 = vdwg.mxu0
    %v1016 = vrot.slane %v1012, 7
    %v1018 = vadd.f32 %v697, %v1016
    %v1019 = vxor.u32 %v1018, 2147483648
    %v1020 = vmul.f32 %v1019, 1.442695
    %v1021 = vpow.pop %v1020
    %v1022 = vadd.f32 %v1021, 1.0
    %v1023 = vrcp.pop %v1022
    %v1024 = vmul.f32 1.0, %v1023
    %v1025 = vtanh.pop %v1018
    %v1027 = vrot.slane %v818, 7
    %v1029 = vmul.f32 %v1024, %v1027
    %1031 = vrot.lane.b32.xlu0 %v1025, 64
    %v1032 = vpop.permute.xlu0 %1031
    %v1034 = vmul.f32 %v1024, %v1032
    %1036 = vrot.lane.b32.xlu0 %v1034, 32
    %v1037 = vpop.permute.xlu0 %1036
    %v1039 = vadd.f32 %v1029, %v1037
    %v1040 = vtanh.pop %v1039
    %1042 = vrot.lane.b32.xlu0 %v1040, 64
    %v1043 = vpop.permute.xlu0 %1042
    %v1045 = vmul.f32 %v1024, %v1043
    %1047 = vrot.lane.b32.xlu0 %v1045, 32
    %v1048 = vpop.permute.xlu0 %1047
    %v1051 = vrot.slane %v942, 7
    %1052 = vrot.lane.b32.xlu0 %v1051, 64
    %v1053 = vpop.permute.xlu0 %1052
    %v1055 = vsel %vm599, %v1048, %v1053
    %v1057 = vrot.slane %v1055, 1
    %v1058 = vsel %vm603, %v1057, 0
    %1060 = vmatprep.subr.mxu0 0.0
    %1061 = vmatpush1.msra.mxu0 %v704
    %1062 = vmatprep.subr.mxu0 0.0
    %1063 = vmatpush1.msra.mxu0 %v705
    %1064 = vmatprep.subr.mxu0 0.0
    %1065 = vmatpush1.msra.mxu0 %v706
    %1066 = vmatprep.subr.mxu0 0.0
    %1067 = vmatpush1.msra.mxu0 %v707
    %1068 = vmatprep.subr.mxu0 0.0
    %1069 = vmatpush1.msra.mxu0 %v708
    %1070 = vmatprep.subr.mxu0 0.0
    %1071 = vmatpush1.msra.mxu0 %v709
    %1072 = vmatprep.subr.mxu0 0.0
    %1073 = vmatpush1.msra.mxu0 %v710
    %1074 = vmatprep.subr.mxu0 0.0
    %1075 = vmatpush1.msra.mxu0 %v711
    %1076 = vmatprep.subr.mxu0 0.0
    %1077 = vmatpush1.msra.mxu0 0.0
    %1078 = vmatprep.subr.mxu0 0.0
    %1079 = vmatpush1.msra.mxu0 0.0
    %1080 = vmatprep.subr.mxu0 0.0
    %1081 = vmatpush1.msra.mxu0 0.0
    %1082 = vmatprep.subr.mxu0 0.0
    %1083 = vmatpush1.msra.mxu0 0.0
    %1084 = vmatprep.subr.mxu0 0.0
    %1085 = vmatpush1.msra.mxu0 0.0
    %1086 = vmatprep.subr.mxu0 0.0
    %1087 = vmatpush1.msra.mxu0 0.0
    %1088 = vmatprep.subr.mxu0 0.0
    %1089 = vmatpush1.msra.mxu0 0.0
    %1090 = vmatprep.subr.mxu0 0.0
    %1091 = vmatpush1.msra.mxu0 0.0
    %1092 = vmatprep.subr.mxu0 0.0
    %1093 = vmatpush1.msra.mxu0 0.0
    %1094 = vmatprep.subr.mxu0 0.0
    %1095 = vmatpush1.msra.mxu0 0.0
    %1096 = vmatprep.subr.mxu0 0.0
    %1097 = vmatpush1.msra.mxu0 0.0
    %1098 = vmatprep.subr.mxu0 0.0
    %1099 = vmatpush1.msra.mxu0 0.0
    %1100 = vmatprep.subr.mxu0 0.0
    %1101 = vmatpush1.msra.mxu0 0.0
    %1102 = vmatprep.subr.mxu0 0.0
    %1103 = vmatpush1.msra.mxu0 0.0
    %1104 = vmatprep.subr.mxu0 0.0
    %1105 = vmatpush1.msra.mxu0 0.0
    %1106 = vmatprep.subr.mxu0 0.0
    %1107 = vmatpush1.msra.mxu0 0.0
    %1108 = vmatprep.subr.mxu0 0.0
    %1109 = vmatpush1.msra.mxu0 0.0
    %1110 = vmatprep.subr.mxu0 0.0
    %1111 = vmatpush1.msra.mxu0 0.0
    %1112 = vmatprep.subr.mxu0 0.0
    %1113 = vmatpush1.msra.mxu0 0.0
    %1114 = vmatprep.subr.mxu0 0.0
    %1115 = vmatpush1.msra.mxu0 0.0
    %1116 = vmatprep.subr.mxu0 0.0
    %1117 = vmatpush1.msra.mxu0 0.0
    %1118 = vmatprep.subr.mxu0 0.0
    %1119 = vmatpush1.msra.mxu0 0.0
    %1120 = vmatprep.subr.mxu0 0.0
    %1121 = vmatpush1.msra.mxu0 0.0
    %1122 = vmatprep.subr.mxu0 0.0
    %1123 = vmatpush1.msra.mxu0 0.0
    %1124 = vmatprep.mubr.f32.mxu0 0.0
    %1125 = vmatmul.mubr.f32.gmra.mrb[0].mxu0 %v1058
    %v1126 = vpop.f32.mrb[0].mxu0
    %v1127 = vadd.f32 %v712, %v1126
    %v1128 = vpop.f32.mrb[0].mxu0
    %1129 = vdwg.mxu0
    %v1130 = vxor.u32 %v1127, 2147483648
    %v1131 = vmul.f32 %v1130, 1.442695
    %v1132 = vpow.pop %v1131
    %v1133 = vadd.f32 %v1132, 1.0
    %v1134 = vrcp.pop %v1133
    %v1135 = vmul.f32 1.0, %v1134
    %v1136 = vtanh.pop %v1127
    %v1137 = vmul.f32 %v1135, %v936
    %1139 = vrot.lane.b32.xlu0 %v1136, 64
    %v1140 = vpop.permute.xlu0 %1139
    %v1142 = vmul.f32 %v1135, %v1140
    %1144 = vrot.lane.b32.xlu0 %v1142, 32
    %v1145 = vpop.permute.xlu0 %1144
    %v1147 = vadd.f32 %v1137, %v1145
    %v1148 = vtanh.pop %v1147
    %1150 = vrot.lane.b32.xlu0 %v1148, 64
    %v1151 = vpop.permute.xlu0 %1150
    %v1153 = vmul.f32 %v1135, %v1151
    %v1154 = vrot.slane %v1045, 1
    %1155 = vrot.lane.b32.xlu0 %v1154, 32
    %v1156 = vpop.permute.xlu0 %1155
    %v1157 = vsel %vm599, %v1156, 0
    %1159 = vmatprep.subr.mxu0 0.0
    %1160 = vmatpush1.msra.mxu0 %v700
    %1161 = vmatprep.subr.mxu0 0.0
    %1162 = vmatpush1.msra.mxu0 %v701
    %1163 = vmatprep.subr.mxu0 0.0
    %1164 = vmatpush1.msra.mxu0 %v702
    %1165 = vmatprep.subr.mxu0 0.0
    %1166 = vmatpush1.msra.mxu0 %v703
    %1167 = vmatprep.subr.mxu0 0.0
    %1168 = vmatpush1.msra.mxu0 0.0
    %1169 = vmatprep.subr.mxu0 0.0
    %1170 = vmatpush1.msra.mxu0 0.0
    %1171 = vmatprep.subr.mxu0 0.0
    %1172 = vmatpush1.msra.mxu0 0.0
    %1173 = vmatprep.subr.mxu0 0.0
    %1174 = vmatpush1.msra.mxu0 0.0
    %1175 = vmatprep.subr.mxu0 0.0
    %1176 = vmatpush1.msra.mxu0 0.0
    %1177 = vmatprep.subr.mxu0 0.0
    %1178 = vmatpush1.msra.mxu0 0.0
    %1179 = vmatprep.subr.mxu0 0.0
    %1180 = vmatpush1.msra.mxu0 0.0
    %1181 = vmatprep.subr.mxu0 0.0
    %1182 = vmatpush1.msra.mxu0 0.0
    %1183 = vmatprep.subr.mxu0 0.0
    %1184 = vmatpush1.msra.mxu0 0.0
    %1185 = vmatprep.subr.mxu0 0.0
    %1186 = vmatpush1.msra.mxu0 0.0
    %1187 = vmatprep.subr.mxu0 0.0
    %1188 = vmatpush1.msra.mxu0 0.0
    %1189 = vmatprep.subr.mxu0 0.0
    %1190 = vmatpush1.msra.mxu0 0.0
    %1191 = vmatprep.subr.mxu0 0.0
    %1192 = vmatpush1.msra.mxu0 0.0
    %1193 = vmatprep.subr.mxu0 0.0
    %1194 = vmatpush1.msra.mxu0 0.0
    %1195 = vmatprep.subr.mxu0 0.0
    %1196 = vmatpush1.msra.mxu0 0.0
    %1197 = vmatprep.subr.mxu0 0.0
    %1198 = vmatpush1.msra.mxu0 0.0
    %1199 = vmatprep.subr.mxu0 0.0
    %1200 = vmatpush1.msra.mxu0 0.0
    %1201 = vmatprep.subr.mxu0 0.0
    %1202 = vmatpush1.msra.mxu0 0.0
    %1203 = vmatprep.subr.mxu0 0.0
    %1204 = vmatpush1.msra.mxu0 0.0
    %1205 = vmatprep.subr.mxu0 0.0
    %1206 = vmatpush1.msra.mxu0 0.0
    %1207 = vmatprep.subr.mxu0 0.0
    %1208 = vmatpush1.msra.mxu0 0.0
    %1209 = vmatprep.subr.mxu0 0.0
    %1210 = vmatpush1.msra.mxu0 0.0
    %1211 = vmatprep.subr.mxu0 0.0
    %1212 = vmatpush1.msra.mxu0 0.0
    %1213 = vmatprep.subr.mxu0 0.0
    %1214 = vmatpush1.msra.mxu0 0.0
    %1215 = vmatprep.subr.mxu0 0.0
    %1216 = vmatpush1.msra.mxu0 0.0
    %1217 = vmatprep.subr.mxu0 0.0
    %1218 = vmatpush1.msra.mxu0 0.0
    %1219 = vmatprep.subr.mxu0 0.0
    %1220 = vmatpush1.msra.mxu0 0.0
    %1221 = vmatprep.subr.mxu0 0.0
    %1222 = vmatpush1.msra.mxu0 0.0
    %1223 = vmatprep.mubr.f32.mxu0 0.0
    %1224 = vmatmul.mubr.f32.gmra.mrb[0].mxu0 %v1157
    %v1225 = vpop.f32.mrb[0].mxu0
    %v1226 = vadd.f32 0.0, %v1225
    %v1227 = vpop.f32.mrb[0].mxu0
    %1228 = vdwg.mxu0
    %v1230 = vrot.slane %v1226, 6
    %v1232 = vadd.f32 %v697, %v1230
    %v1233 = vxor.u32 %v1232, 2147483648
    %v1234 = vmul.f32 %v1233, 1.442695
    %v1235 = vpow.pop %v1234
    %v1236 = vadd.f32 %v1235, 1.0
    %v1237 = vrcp.pop %v1236
    %v1238 = vmul.f32 1.0, %v1237
    %v1239 = vtanh.pop %v1232
    %v1241 = vrot.slane %v1039, 7
    %v1243 = vmul.f32 %v1238, %v1241
    %1245 = vrot.lane.b32.xlu0 %v1239, 64
    %v1246 = vpop.permute.xlu0 %1245
    %v1248 = vmul.f32 %v1238, %v1246
    %1250 = vrot.lane.b32.xlu0 %v1248, 32
    %v1251 = vpop.permute.xlu0 %1250
    %v1253 = vadd.f32 %v1243, %v1251
    %v1254 = vtanh.pop %v1253
    %1256 = vrot.lane.b32.xlu0 %v1254, 64
    %v1257 = vpop.permute.xlu0 %1256
    %v1259 = vmul.f32 %v1238, %v1257
    %1261 = vrot.lane.b32.xlu0 %v1259, 32
    %v1262 = vpop.permute.xlu0 %1261
    %v1265 = vrot.slane %v1153, 6
    %1266 = vrot.lane.b32.xlu0 %v1265, 64
    %v1267 = vpop.permute.xlu0 %1266
    %v1269 = vsel %vm599, %v1262, %v1267
    %v1271 = vrot.slane %v1269, 2
    %v1272 = vsel %vm603, %v1271, 0
    %1274 = vmatprep.subr.mxu0 0.0
    %1275 = vmatpush1.msra.mxu0 %v704
    %1276 = vmatprep.subr.mxu0 0.0
    %1277 = vmatpush1.msra.mxu0 %v705
    %1278 = vmatprep.subr.mxu0 0.0
    %1279 = vmatpush1.msra.mxu0 %v706
    %1280 = vmatprep.subr.mxu0 0.0
    %1281 = vmatpush1.msra.mxu0 %v707
    %1282 = vmatprep.subr.mxu0 0.0
    %1283 = vmatpush1.msra.mxu0 %v708
    %1284 = vmatprep.subr.mxu0 0.0
    %1285 = vmatpush1.msra.mxu0 %v709
    %1286 = vmatprep.subr.mxu0 0.0
    %1287 = vmatpush1.msra.mxu0 %v710
    %1288 = vmatprep.subr.mxu0 0.0
    %1289 = vmatpush1.msra.mxu0 %v711
    %1290 = vmatprep.subr.mxu0 0.0
    %1291 = vmatpush1.msra.mxu0 0.0
    %1292 = vmatprep.subr.mxu0 0.0
    %1293 = vmatpush1.msra.mxu0 0.0
    %1294 = vmatprep.subr.mxu0 0.0
    %1295 = vmatpush1.msra.mxu0 0.0
    %1296 = vmatprep.subr.mxu0 0.0
    %1297 = vmatpush1.msra.mxu0 0.0
    %1298 = vmatprep.subr.mxu0 0.0
    %1299 = vmatpush1.msra.mxu0 0.0
    %1300 = vmatprep.subr.mxu0 0.0
    %1301 = vmatpush1.msra.mxu0 0.0
    %1302 = vmatprep.subr.mxu0 0.0
    %1303 = vmatpush1.msra.mxu0 0.0
    %1304 = vmatprep.subr.mxu0 0.0
    %1305 = vmatpush1.msra.mxu0 0.0
    %1306 = vmatprep.subr.mxu0 0.0
    %1307 = vmatpush1.msra.mxu0 0.0
    %1308 = vmatprep.subr.mxu0 0.0
    %1309 = vmatpush1.msra.mxu0 0.0
    %1310 = vmatprep.subr.mxu0 0.0
    %1311 = vmatpush1.msra.mxu0 0.0
    %1312 = vmatprep.subr.mxu0 0.0
    %1313 = vmatpush1.msra.mxu0 0.0
    %1314 = vmatprep.subr.mxu0 0.0
    %1315 = vmatpush1.msra.mxu0 0.0
    %1316 = vmatprep.subr.mxu0 0.0
    %1317 = vmatpush1.msra.mxu0 0.0
    %1318 = vmatprep.subr.mxu0 0.0
    %1319 = vmatpush1.msra.mxu0 0.0
    %1320 = vmatprep.subr.mxu0 0.0
    %1321 = vmatpush1.msra.mxu0 0.0
    %1322 = vmatprep.subr.mxu0 0.0
    %1323 = vmatpush1.msra.mxu0 0.0
    %1324 = vmatprep.subr.mxu0 0.0
    %1325 = vmatpush1.msra.mxu0 0.0
    %1326 = vmatprep.subr.mxu0 0.0
    %1327 = vmatpush1.msra.mxu0 0.0
    %1328 = vmatprep.subr.mxu0 0.0
    %1329 = vmatpush1.msra.mxu0 0.0
    %1330 = vmatprep.subr.mxu0 0.0
    %1331 = vmatpush1.msra.mxu0 0.0
    %1332 = vmatprep.subr.mxu0 0.0
    %1333 = vmatpush1.msra.mxu0 0.0
    %1334 = vmatprep.subr.mxu0 0.0
    %1335 = vmatpush1.msra.mxu0 0.0
    %1336 = vmatprep.subr.mxu0 0.0
    %1337 = vmatpush1.msra.mxu0 0.0
    %1338 = vmatprep.mubr.f32.mxu0 0.0
    %1339 = vmatmul.mubr.f32.gmra.mrb[0].mxu0 %v1272
    %v1340 = vpop.f32.mrb[0].mxu0
    %v1341 = vadd.f32 %v712, %v1340
    %v1342 = vpop.f32.mrb[0].mxu0
    %1343 = vdwg.mxu0
    %v1344 = vxor.u32 %v1341, 2147483648
    %v1345 = vmul.f32 %v1344, 1.442695
    %v1346 = vpow.pop %v1345
    %v1347 = vadd.f32 %v1346, 1.0
    %v1348 = vrcp.pop %v1347
    %v1349 = vmul.f32 1.0, %v1348
    %v1350 = vtanh.pop %v1341
    %v1351 = vmul.f32 %v1349, %v1147
    %1353 = vrot.lane.b32.xlu0 %v1350, 64
    %v1354 = vpop.permute.xlu0 %1353
    %v1356 = vmul.f32 %v1349, %v1354
    %1358 = vrot.lane.b32.xlu0 %v1356, 32
    %v1359 = vpop.permute.xlu0 %1358
    %v1361 = vadd.f32 %v1351, %v1359
    %v1362 = vtanh.pop %v1361
    %1364 = vrot.lane.b32.xlu0 %v1362, 64
    %v1365 = vpop.permute.xlu0 %1364
    %v1367 = vmul.f32 %v1349, %v1365
    %v1368 = vrot.slane %v1259, 2
    %1369 = vrot.lane.b32.xlu0 %v1368, 32
    %v1370 = vpop.permute.xlu0 %1369
    %v1371 = vsel %vm599, %v1370, 0
    %1373 = vmatprep.subr.mxu0 0.0
    %1374 = vmatpush1.msra.mxu0 %v700
    %1375 = vmatprep.subr.mxu0 0.0
    %1376 = vmatpush1.msra.mxu0 %v701
    %1377 = vmatprep.subr.mxu0 0.0
    %1378 = vmatpush1.msra.mxu0 %v702
    %1379 = vmatprep.subr.mxu0 0.0
    %1380 = vmatpush1.msra.mxu0 %v703
    %1381 = vmatprep.subr.mxu0 0.0
    %1382 = vmatpush1.msra.mxu0 0.0
    %1383 = vmatprep.subr.mxu0 0.0
    %1384 = vmatpush1.msra.mxu0 0.0
    %1385 = vmatprep.subr.mxu0 0.0
    %1386 = vmatpush1.msra.mxu0 0.0
    %1387 = vmatprep.subr.mxu0 0.0
    %1388 = vmatpush1.msra.mxu0 0.0
    %1389 = vmatprep.subr.mxu0 0.0
    %1390 = vmatpush1.msra.mxu0 0.0
    %1391 = vmatprep.subr.mxu0 0.0
    %1392 = vmatpush1.msra.mxu0 0.0
    %1393 = vmatprep.subr.mxu0 0.0
    %1394 = vmatpush1.msra.mxu0 0.0
    %1395 = vmatprep.subr.mxu0 0.0
    %1396 = vmatpush1.msra.mxu0 0.0
    %1397 = vmatprep.subr.mxu0 0.0
    %1398 = vmatpush1.msra.mxu0 0.0
    %1399 = vmatprep.subr.mxu0 0.0
    %1400 = vmatpush1.msra.mxu0 0.0
    %1401 = vmatprep.subr.mxu0 0.0
    %1402 = vmatpush1.msra.mxu0 0.0
    %1403 = vmatprep.subr.mxu0 0.0
    %1404 = vmatpush1.msra.mxu0 0.0
    %1405 = vmatprep.subr.mxu0 0.0
    %1406 = vmatpush1.msra.mxu0 0.0
    %1407 = vmatprep.subr.mxu0 0.0
    %1408 = vmatpush1.msra.mxu0 0.0
    %1409 = vmatprep.subr.mxu0 0.0
    %1410 = vmatpush1.msra.mxu0 0.0
    %1411 = vmatprep.subr.mxu0 0.0
    %1412 = vmatpush1.msra.mxu0 0.0
    %1413 = vmatprep.subr.mxu0 0.0
    %1414 = vmatpush1.msra.mxu0 0.0
    %1415 = vmatprep.subr.mxu0 0.0
    %1416 = vmatpush1.msra.mxu0 0.0
    %1417 = vmatprep.subr.mxu0 0.0
    %1418 = vmatpush1.msra.mxu0 0.0
    %1419 = vmatprep.subr.mxu0 0.0
    %1420 = vmatpush1.msra.mxu0 0.0
    %1421 = vmatprep.subr.mxu0 0.0
    %1422 = vmatpush1.msra.mxu0 0.0
    %1423 = vmatprep.subr.mxu0 0.0
    %1424 = vmatpush1.msra.mxu0 0.0
    %1425 = vmatprep.subr.mxu0 0.0
    %1426 = vmatpush1.msra.mxu0 0.0
    %1427 = vmatprep.subr.mxu0 0.0
    %1428 = vmatpush1.msra.mxu0 0.0
    %1429 = vmatprep.subr.mxu0 0.0
    %1430 = vmatpush1.msra.mxu0 0.0
    %1431 = vmatprep.subr.mxu0 0.0
    %1432 = vmatpush1.msra.mxu0 0.0
    %1433 = vmatprep.subr.mxu0 0.0
    %1434 = vmatpush1.msra.mxu0 0.0
    %1435 = vmatprep.subr.mxu0 0.0
    %1436 = vmatpush1.msra.mxu0 0.0
    %1437 = vmatprep.mubr.f32.mxu0 0.0
    %1438 = vmatmul.mubr.f32.gmra.mrb[0].mxu0 %v1371
    %v1439 = vpop.f32.mrb[0].mxu0
    %v1440 = vadd.f32 0.0, %v1439
    %v1441 = vpop.f32.mrb[0].mxu0
    %1442 = vdwg.mxu0
    %v1444 = vrot.slane %v1440, 5
    %v1446 = vadd.f32 %v697, %v1444
    %v1447 = vxor.u32 %v1446, 2147483648
    %v1448 = vmul.f32 %v1447, 1.442695
    %v1449 = vpow.pop %v1448
    %v1450 = vadd.f32 %v1449, 1.0
    %v1451 = vrcp.pop %v1450
    %v1452 = vmul.f32 1.0, %v1451
    %v1453 = vtanh.pop %v1446
    %v1455 = vrot.slane %v1253, 7
    %v1457 = vmul.f32 %v1452, %v1455
    %1459 = vrot.lane.b32.xlu0 %v1453, 64
    %v1460 = vpop.permute.xlu0 %1459
    %v1462 = vmul.f32 %v1452, %v1460
    %1464 = vrot.lane.b32.xlu0 %v1462, 32
    %v1465 = vpop.permute.xlu0 %1464
    %v1467 = vadd.f32 %v1457, %v1465
    %v1468 = vtanh.pop %v1467
    %1470 = vrot.lane.b32.xlu0 %v1468, 64
    %v1471 = vpop.permute.xlu0 %1470
    %v1473 = vmul.f32 %v1452, %v1471
    %1475 = vrot.lane.b32.xlu0 %v1473, 32
    %v1476 = vpop.permute.xlu0 %1475
    %v1479 = vrot.slane %v1367, 5
    %1480 = vrot.lane.b32.xlu0 %v1479, 64
    %v1481 = vpop.permute.xlu0 %1480
    %v1483 = vsel %vm599, %v1476, %v1481
    %v1485 = vrot.slane %v1483, 3
    %v1486 = vsel %vm603, %v1485, 0
    %1488 = vmatprep.subr.mxu0 0.0
    %1489 = vmatpush1.msra.mxu0 %v704
    %1490 = vmatprep.subr.mxu0 0.0
    %1491 = vmatpush1.msra.mxu0 %v705
    %1492 = vmatprep.subr.mxu0 0.0
    %1493 = vmatpush1.msra.mxu0 %v706
    %1494 = vmatprep.subr.mxu0 0.0
    %1495 = vmatpush1.msra.mxu0 %v707
    %1496 = vmatprep.subr.mxu0 0.0
    %1497 = vmatpush1.msra.mxu0 %v708
    %1498 = vmatprep.subr.mxu0 0.0
    %1499 = vmatpush1.msra.mxu0 %v709
    %1500 = vmatprep.subr.mxu0 0.0
    %1501 = vmatpush1.msra.mxu0 %v710
    %1502 = vmatprep.subr.mxu0 0.0
    %1503 = vmatpush1.msra.mxu0 %v711
    %1504 = vmatprep.subr.mxu0 0.0
    %1505 = vmatpush1.msra.mxu0 0.0
    %1506 = vmatprep.subr.mxu0 0.0
    %1507 = vmatpush1.msra.mxu0 0.0
    %1508 = vmatprep.subr.mxu0 0.0
    %1509 = vmatpush1.msra.mxu0 0.0
    %1510 = vmatprep.subr.mxu0 0.0
    %1511 = vmatpush1.msra.mxu0 0.0
    %1512 = vmatprep.subr.mxu0 0.0
    %1513 = vmatpush1.msra.mxu0 0.0
    %1514 = vmatprep.subr.mxu0 0.0
    %1515 = vmatpush1.msra.mxu0 0.0
    %1516 = vmatprep.subr.mxu0 0.0
    %1517 = vmatpush1.msra.mxu0 0.0
    %1518 = vmatprep.subr.mxu0 0.0
    %1519 = vmatpush1.msra.mxu0 0.0
    %1520 = vmatprep.subr.mxu0 0.0
    %1521 = vmatpush1.msra.mxu0 0.0
    %1522 = vmatprep.subr.mxu0 0.0
    %1523 = vmatpush1.msra.mxu0 0.0
    %1524 = vmatprep.subr.mxu0 0.0
    %1525 = vmatpush1.msra.mxu0 0.0
    %1526 = vmatprep.subr.mxu0 0.0
    %1527 = vmatpush1.msra.mxu0 0.0
    %1528 = vmatprep.subr.mxu0 0.0
    %1529 = vmatpush1.msra.mxu0 0.0
    %1530 = vmatprep.subr.mxu0 0.0
    %1531 = vmatpush1.msra.mxu0 0.0
    %1532 = vmatprep.subr.mxu0 0.0
    %1533 = vmatpush1.msra.mxu0 0.0
    %1534 = vmatprep.subr.mxu0 0.0
    %1535 = vmatpush1.msra.mxu0 0.0
    %1536 = vmatprep.subr.mxu0 0.0
    %1537 = vmatpush1.msra.mxu0 0.0
    %1538 = vmatprep.subr.mxu0 0.0
    %1539 = vmatpush1.msra.mxu0 0.0
    %1540 = vmatprep.subr.mxu0 0.0
    %1541 = vmatpush1.msra.mxu0 0.0
    %1542 = vmatprep.subr.mxu0 0.0
    %1543 = vmatpush1.msra.mxu0 0.0
    %1544 = vmatprep.subr.mxu0 0.0
    %1545 = vmatpush1.msra.mxu0 0.0
    %1546 = vmatprep.subr.mxu0 0.0
    %1547 = vmatpush1.msra.mxu0 0.0
    %1548 = vmatprep.subr.mxu0 0.0
    %1549 = vmatpush1.msra.mxu0 0.0
    %1550 = vmatprep.subr.mxu0 0.0
    %1551 = vmatpush1.msra.mxu0 0.0
    %1552 = vmatprep.mubr.f32.mxu0 0.0
    %1553 = vmatmul.mubr.f32.gmra.mrb[0].mxu0 %v1486
    %v1554 = vpop.f32.mrb[0].mxu0
    %v1555 = vadd.f32 %v712, %v1554
    %v1556 = vpop.f32.mrb[0].mxu0
    %1557 = vdwg.mxu0
    %v1558 = vxor.u32 %v1555, 2147483648
    %v1559 = vmul.f32 %v1558, 1.442695
    %v1560 = vpow.pop %v1559
    %v1561 = vadd.f32 %v1560, 1.0
    %v1562 = vrcp.pop %v1561
    %v1563 = vmul.f32 1.0, %v1562
    %v1564 = vtanh.pop %v1555
    %v1565 = vmul.f32 %v1563, %v1361
    %1567 = vrot.lane.b32.xlu0 %v1564, 64
    %v1568 = vpop.permute.xlu0 %1567
    %v1570 = vmul.f32 %v1563, %v1568
    %1572 = vrot.lane.b32.xlu0 %v1570, 32
    %v1573 = vpop.permute.xlu0 %1572
    %v1575 = vadd.f32 %v1565, %v1573
    %v1576 = vtanh.pop %v1575
    %1578 = vrot.lane.b32.xlu0 %v1576, 64
    %v1579 = vpop.permute.xlu0 %1578
    %v1581 = vmul.f32 %v1563, %v1579
    %v1582 = vrot.slane %v1153, 7
    %v1584 = vrot.slane %v1367, 6
    %v1587 = vrot.slane %v1581, 5
    %vm1589 = vcmask 1040384
    %v1590 = vsel %vm1589, %v942, %v1582
    %vm1591 = vcmask 1041408
    %v1592 = vsel %vm1591, %v1590, %v1584
    %vm1593 = vcmask 1042432
    %v1594 = vsel %vm1593, %v1592, %v1587
    %v1595 = vld [vmem:[%s8] sm:$0xff]
    %v1596 = vld [vmem:[%s8 + $0x8] sm:$0xff]
    %v1597 = vld [vmem:[%s8 + $0x10] sm:$0xff]
    %v1598 = vld [vmem:[%s8 + $0x18] sm:$0xff]
    %v1599 = vld [vmem:[#allocation2] sm:$0x1]
    %v1601 = vlaneseq
    %v1602 = vshrl.u32 %v1601, 7
    %v1603 = vsub.s32 0, %v1602
    %v1604 = vrot.slane %v1599, %v1603
    %1607 = vrot.lane.b32.xlu0 %v1594, 32
    %v1608 = vpop.permute.xlu0 %1607
    %v1609 = vsel %vm599, %v1608, 0
    %1611 = vmatprep.subr.mxu0 0.0
    %1612 = vmatpush1.msra.mxu0 %v1595
    %1613 = vmatprep.subr.mxu0 0.0
    %1614 = vmatpush1.msra.mxu0 %v1596
    %1615 = vmatprep.subr.mxu0 0.0
    %1616 = vmatpush1.msra.mxu0 %v1597
    %1617 = vmatprep.subr.mxu0 0.0
    %1618 = vmatpush1.msra.mxu0 %v1598
    %1619 = vmatprep.subr.mxu0 0.0
    %1620 = vmatpush1.msra.mxu0 0.0
    %1621 = vmatprep.subr.mxu0 0.0
    %1622 = vmatpush1.msra.mxu0 0.0
    %1623 = vmatprep.subr.mxu0 0.0
    %1624 = vmatpush1.msra.mxu0 0.0
    %1625 = vmatprep.subr.mxu0 0.0
    %1626 = vmatpush1.msra.mxu0 0.0
    %1627 = vmatprep.subr.mxu0 0.0
    %1628 = vmatpush1.msra.mxu0 0.0
    %1629 = vmatprep.subr.mxu0 0.0
    %1630 = vmatpush1.msra.mxu0 0.0
    %1631 = vmatprep.subr.mxu0 0.0
    %1632 = vmatpush1.msra.mxu0 0.0
    %1633 = vmatprep.subr.mxu0 0.0
    %1634 = vmatpush1.msra.mxu0 0.0
    %1635 = vmatprep.subr.mxu0 0.0
    %1636 = vmatpush1.msra.mxu0 0.0
    %1637 = vmatprep.subr.mxu0 0.0
    %1638 = vmatpush1.msra.mxu0 0.0
    %1639 = vmatprep.subr.mxu0 0.0
    %1640 = vmatpush1.msra.mxu0 0.0
    %1641 = vmatprep.subr.mxu0 0.0
    %1642 = vmatpush1.msra.mxu0 0.0
    %1643 = vmatprep.subr.mxu0 0.0
    %1644 = vmatpush1.msra.mxu0 0.0
    %1645 = vmatprep.subr.mxu0 0.0
    %1646 = vmatpush1.msra.mxu0 0.0
    %1647 = vmatprep.subr.mxu0 0.0
    %1648 = vmatpush1.msra.mxu0 0.0
    %1649 = vmatprep.subr.mxu0 0.0
    %1650 = vmatpush1.msra.mxu0 0.0
    %1651 = vmatprep.subr.mxu0 0.0
    %1652 = vmatpush1.msra.mxu0 0.0
    %1653 = vmatprep.subr.mxu0 0.0
    %1654 = vmatpush1.msra.mxu0 0.0
    %1655 = vmatprep.subr.mxu0 0.0
    %1656 = vmatpush1.msra.mxu0 0.0
    %1657 = vmatprep.subr.mxu0 0.0
    %1658 = vmatpush1.msra.mxu0 0.0
    %1659 = vmatprep.subr.mxu0 0.0
    %1660 = vmatpush1.msra.mxu0 0.0
    %1661 = vmatprep.subr.mxu0 0.0
    %1662 = vmatpush1.msra.mxu0 0.0
    %1663 = vmatprep.subr.mxu0 0.0
    %1664 = vmatpush1.msra.mxu0 0.0
    %1665 = vmatprep.subr.mxu0 0.0
    %1666 = vmatpush1.msra.mxu0 0.0
    %1667 = vmatprep.subr.mxu0 0.0
    %1668 = vmatpush1.msra.mxu0 0.0
    %1669 = vmatprep.subr.mxu0 0.0
    %1670 = vmatpush1.msra.mxu0 0.0
    %1671 = vmatprep.subr.mxu0 0.0
    %1672 = vmatpush1.msra.mxu0 0.0
    %1673 = vmatprep.subr.mxu0 0.0
    %1674 = vmatpush1.msra.mxu0 0.0
    %1675 = vmatprep.mubr.f32.mxu0 0.0
    %1676 = vmatmul.mubr.f32.gmra.mrb[0].mxu0 %v1609
    %v1677 = vpop.f32.mrb[0].mxu0
    %v1678 = vadd.f32 %v1604, %v1677
    %v1679 = vpop.f32.mrb[0].mxu0
    %1680 = vdwg.mxu0
    %vm1681 = vcmask 3072
    %1682 = vst.msk [vmem:[%s12] sm:$0xf] %vm1681, %v1678
    // Predicated region
    $region74: #{lstm_embedding_forward.1} parent=1 // pred_check
      _
    $region75: #{lstm_embedding_forward.1} parent=1 // pred_check_branch
      %1684 = sbr.rel (0) target = $region77
    $region76: #{lstm_embedding_forward.1} parent=1 // pred_region
      _
    $region77: #{lstm_embedding_forward.1} parent=1 // pred_fallthru
      _
    // Predicated region
    $region78: #{lstm_embedding_forward.1} parent=1 // pred_check
      _
    $region79: #{lstm_embedding_forward.1} parent=1 // pred_check_branch
      %1686 = sbr.rel (0) target = $region81
    $region80: #{lstm_embedding_forward.1} parent=1 // pred_region
      _
    $region81: #{lstm_embedding_forward.1} parent=1 // pred_fallthru
      _
    %1687 = vsyncpa [#allocation4], 1
    %1688 = vsyncpa [#allocation6], 1
    %1689 = vsyncpa [#allocation9], 1
    %1690 = vsyncpa [#allocation12], 1

</llo_original>
